<compile_context>
chip_gen: v7x
topology: tpu7x:2x2x1
jax: 0.10.0
libtpu: 0.0.40
codegen_flags: <defaults>
</compile_context>

<pallas_src>
import jax
import jax.numpy as jnp
from jax.experimental import pallas as pl
from jax.experimental.pallas import tpu as pltpu


# fc1..fc6 of Net2506
LAYER_DIMS = [(42, 512), (512, 512), (512, 256), (256, 64), (64, 16), (16, 2)]
IN_FEAT = 42
K_PAD = 128      # fc1 contraction dim padded 42 -> 128 (lane quantum)
OUT_DIM = 2
OUT_PAD = 128    # fc6 output dim padded 2 -> 128 (lane-dense stores/DMA)


# ----------------------------------------------------------------------------
# Pallas kernel: whole MLP fused, one batch tile per grid step.
# Weights stay VMEM-resident across grid steps (constant index_map); only the
# x / out batch tiles are streamed.
# ----------------------------------------------------------------------------
def net2506_kernel(x_ref,
                   w1_ref, b1_ref,
                   w2_ref, b2_ref,
                   w3_ref, b3_ref,
                   w4_ref, b4_ref,
                   w5_ref, b5_ref,
                   w6_ref, b6_ref,
                   out_ref):
    h = x_ref[...]                       # bf16, K zero-padded to 128

    def linear_relu(h, w_ref, b_ref):
        y = jnp.dot(h, w_ref[...], preferred_element_type=jnp.float32)
        y = y + b_ref[...]               # (1, out) f32 bias broadcasts over batch
        return jnp.maximum(y, 0.0).astype(jnp.bfloat16)

    # seq1  (dropout = identity in eval mode)
    h = linear_relu(h, w1_ref, b1_ref)   # 128(=pad 42) -> 512
    h = linear_relu(h, w2_ref, b2_ref)   # 512 -> 512
    h = linear_relu(h, w3_ref, b3_ref)   # 512 -> 256
    h = linear_relu(h, w4_ref, b4_ref)   # 256 -> 64

    # seq2
    h = linear_relu(h, w5_ref, b5_ref)   # 64  -> 16
    y = jnp.dot(h, w6_ref[...], preferred_element_type=jnp.float32)
    y = y + b6_ref[...]                  # 16  -> 128(=pad 2), no activation

    out_ref[...] = y.astype(out_ref.dtype)


def _round_up(a, m):
    return (a + m - 1) // m * m


def _choose_tiling(batch, cap=512):
    """Pick (tile_m, padded_batch).  tile_m is a multiple of 8, capped at `cap`,
    with >=2 balanced tiles once batch >= 256 (v7x 2-TC occupancy) and minimal
    zero-row padding otherwise."""
    n_tiles = max(1, pl.cdiv(batch, cap))
    if batch >= 256:
        n_tiles = max(n_tiles, 2)        # let v7x shard across both TensorCores
    tile_m = _round_up(max(pl.cdiv(batch, n_tiles), 8), 8)
    return tile_m, tile_m * n_tiles


# ----------------------------------------------------------------------------
# One-time parameter preparation (call once, reuse across forward calls).
# Weights come in as [in, out] f32 (already transposed vs torch's [out, in]).
# ----------------------------------------------------------------------------
def prepare_params(params):
    prepped = []
    n = len(params)
    for li, (w, b) in enumerate(params):
        w_bf = w.astype(jnp.bfloat16)
        b32 = b.astype(jnp.float32)
        if li == 0:                      # pad fc1's contraction dim with zeros
            w_bf = jnp.pad(w_bf, ((0, K_PAD - w.shape[0]), (0, 0)))
        if li == n - 1:                  # pad fc6's output dim -> lane-dense out
            w_bf = jnp.pad(w_bf, ((0, 0), (0, OUT_PAD - w.shape[1])))
            b32 = jnp.pad(b32, (0, OUT_PAD - b.shape[0]))
        prepped.append((w_bf, b32.reshape(1, -1)))
    return tuple(prepped)


# ----------------------------------------------------------------------------
# Jitted forward.  x: [batch, 42] f32.  prepped: output of prepare_params.
# ----------------------------------------------------------------------------
@jax.jit
def net2506_forward(x, prepped):
    batch, in_feat = x.shape
    tile_m, padded_batch = _choose_tiling(batch)
    grid = (padded_batch // tile_m,)

    # Single fused pad+cast under jit (batch pad + 42->128 feature pad, bf16).
    x_bf = jnp.pad(x.astype(jnp.bfloat16),
                   ((0, padded_batch - batch), (0, K_PAD - in_feat)))

    flat = []
    in_specs = [pl.BlockSpec((tile_m, K_PAD), lambda i: (i, 0))]
    for w_bf, b32 in prepped:
        flat.extend([w_bf, b32])
        # Full-array blocks, constant index_map -> resident across grid steps.
        in_specs.append(pl.BlockSpec(w_bf.shape, lambda i: (0, 0)))
        in_specs.append(pl.BlockSpec(b32.shape, lambda i: (0, 0)))

    out = pl.pallas_call(
        net2506_kernel,
        out_shape=jax.ShapeDtypeStruct((padded_batch, OUT_PAD), jnp.float32),
        grid=grid,
        in_specs=in_specs,
        out_specs=pl.BlockSpec((tile_m, OUT_PAD), lambda i: (i, 0)),
        compiler_params=pltpu.CompilerParams(
            dimension_semantics=("parallel",)),
    )(x_bf, *flat)
    return out[:batch, :OUT_DIM]


# ----------------------------------------------------------------------------
# Deterministic parameter init (mimics PyTorch nn.Linear default:
# U(-1/sqrt(fan_in), +1/sqrt(fan_in)) for both weight and bias).
# Weights stored [in, out].
# ----------------------------------------------------------------------------
def init_params(key):
    params = []
    for i, (fan_in, fan_out) in enumerate(LAYER_DIMS):
        kw, kb = jax.random.split(jax.random.fold_in(key, i))
        bound = 1.0 / jnp.sqrt(float(fan_in))
        w = jax.random.uniform(kw, (fan_in, fan_out), jnp.float32, -bound, bound)
        b = jax.random.uniform(kb, (fan_out,), jnp.float32, -bound, bound)
        params.append((w, b))
    return params


# Pure-JAX reference matching the kernel's bf16-weight numerics
# (bf16 operands, f32 accumulation, f32 bias add).
def reference_forward(x, params):
    h = x.astype(jnp.bfloat16)
    for i, (w, b) in enumerate(params):
        y = jnp.dot(h, w.astype(jnp.bfloat16),
                    preferred_element_type=jnp.float32) + b.reshape(1, -1)
        if i != len(params) - 1:         # ReLU after every layer except fc6
            h = jnp.maximum(y, 0.0).astype(jnp.bfloat16)
        else:
            h = y
    return h


if __name__ == "__main__":
    key = jax.random.PRNGKey(0)
    k_x, k_p = jax.random.split(key)

    params = init_params(k_p)
    prepped = prepare_params(params)     # one-time weight prep

    # batch=8: single-tile path.  batch=300: multi-tile + batch-padding path
    # (2 tiles of 152 rows, exercises the "parallel" grid dimension).
    for batch in (8, 300):
        x = jax.random.normal(jax.random.fold_in(k_x, batch),
                              (batch, IN_FEAT), jnp.float32)
        out = jax.block_until_ready(net2506_forward(x, prepped))
        ref = reference_forward(x, params)
        assert out.shape == (batch, OUT_DIM), out.shape
        max_err = jnp.max(jnp.abs(out - ref))
        assert jnp.allclose(out, ref, atol=1e-2, rtol=1e-2), (
            f"batch={batch} max abs err {max_err}")

    print("KERNEL_OK")
</pallas_src>

<mosaic_0001>
module attributes {stable_mosaic.version = 11 : i64} {
  func.func @net2506_kernel(%arg0: i32, %arg1: memref<8x128xbf16, #tpu.memory_space<vmem>>, %arg2: memref<128x512xbf16, #tpu.memory_space<vmem>>, %arg3: memref<1x512xf32, #tpu.memory_space<vmem>>, %arg4: memref<512x512xbf16, #tpu.memory_space<vmem>>, %arg5: memref<1x512xf32, #tpu.memory_space<vmem>>, %arg6: memref<512x256xbf16, #tpu.memory_space<vmem>>, %arg7: memref<1x256xf32, #tpu.memory_space<vmem>>, %arg8: memref<256x64xbf16, #tpu.memory_space<vmem>>, %arg9: memref<1x64xf32, #tpu.memory_space<vmem>>, %arg10: memref<64x16xbf16, #tpu.memory_space<vmem>>, %arg11: memref<1x16xf32, #tpu.memory_space<vmem>>, %arg12: memref<16x128xbf16, #tpu.memory_space<vmem>>, %arg13: memref<1x128xf32, #tpu.memory_space<vmem>>, %arg14: memref<8x128xf32, #tpu.memory_space<vmem>>) attributes {dimension_semantics = [#tpu.dimension_semantics<parallel>], iteration_bounds = array<i64: 1>, scalar_prefetch = 0 : i64, scratch_operands = 0 : i64, tpu.core_type = #tpu.core_type<tc>, window_params = [{transform_indices = @transform_0, window_bounds = array<i64: 8, 128>}, {pipeline_mode = #tpu.pipeline_mode<synchronous>, transform_indices = @transform_1, window_bounds = array<i64: 128, 512>}, {pipeline_mode = #tpu.pipeline_mode<synchronous>, transform_indices = @transform_2, window_bounds = array<i64: 1, 512>}, {pipeline_mode = #tpu.pipeline_mode<synchronous>, transform_indices = @transform_3, window_bounds = array<i64: 512, 512>}, {pipeline_mode = #tpu.pipeline_mode<synchronous>, transform_indices = @transform_4, window_bounds = array<i64: 1, 512>}, {pipeline_mode = #tpu.pipeline_mode<synchronous>, transform_indices = @transform_5, window_bounds = array<i64: 512, 256>}, {pipeline_mode = #tpu.pipeline_mode<synchronous>, transform_indices = @transform_6, window_bounds = array<i64: 1, 256>}, {pipeline_mode = #tpu.pipeline_mode<synchronous>, transform_indices = @transform_7, window_bounds = array<i64: 256, 64>}, {pipeline_mode = #tpu.pipeline_mode<synchronous>, transform_indices = @transform_8, window_bounds = array<i64: 1, 64>}, {pipeline_mode = #tpu.pipeline_mode<synchronous>, transform_indices = @transform_9, window_bounds = array<i64: 64, 16>}, {pipeline_mode = #tpu.pipeline_mode<synchronous>, transform_indices = @transform_10, window_bounds = array<i64: 1, 16>}, {pipeline_mode = #tpu.pipeline_mode<synchronous>, transform_indices = @transform_11, window_bounds = array<i64: 16, 128>}, {pipeline_mode = #tpu.pipeline_mode<synchronous>, transform_indices = @transform_12, window_bounds = array<i64: 1, 128>}, {transform_indices = @transform_13, window_bounds = array<i64: 8, 128>}]} {
    %c0 = arith.constant 0 : index
    %c0_0 = arith.constant 0 : index
    %0 = vector.load %arg1[%c0, %c0_0] : memref<8x128xbf16, #tpu.memory_space<vmem>>, vector<8x128xbf16>
    %c0_1 = arith.constant 0 : index
    %c0_2 = arith.constant 0 : index
    %1 = vector.load %arg2[%c0_1, %c0_2] : memref<128x512xbf16, #tpu.memory_space<vmem>>, vector<128x512xbf16>
    %cst = arith.constant dense<0.000000e+00> : vector<8x512xf32>
    %2 = tpu.matmul %0, %1, %cst {dimension_numbers = #tpu.dot_dimension_numbers<[1], [0], [0], [1], [0, 0, 1, 1], [], []>} : vector<8x128xbf16>, vector<128x512xbf16>, vector<8x512xf32> -> vector<8x512xf32>
    %c0_3 = arith.constant 0 : index
    %c0_4 = arith.constant 0 : index
    %3 = vector.load %arg3[%c0_3, %c0_4] : memref<1x512xf32, #tpu.memory_space<vmem>>, vector<1x512xf32>
    %4 = vector.broadcast %3 : vector<1x512xf32> to vector<8x512xf32>
    %5 = arith.addf %2, %4 : vector<8x512xf32>
    %cst_5 = arith.constant 0.000000e+00 : f32
    %6 = vector.broadcast %cst_5 : f32 to vector<8x512xf32>
    %7 = arith.maximumf %5, %6 : vector<8x512xf32>
    %8 = arith.truncf %7 : vector<8x512xf32> to vector<8x512xbf16>
    %c0_6 = arith.constant 0 : index
    %c0_7 = arith.constant 0 : index
    %9 = vector.load %arg4[%c0_6, %c0_7] : memref<512x512xbf16, #tpu.memory_space<vmem>>, vector<512x512xbf16>
    %cst_8 = arith.constant dense<0.000000e+00> : vector<8x512xf32>
    %10 = tpu.matmul %8, %9, %cst_8 {dimension_numbers = #tpu.dot_dimension_numbers<[1], [0], [0], [1], [0, 0, 1, 1], [], []>} : vector<8x512xbf16>, vector<512x512xbf16>, vector<8x512xf32> -> vector<8x512xf32>
    %c0_9 = arith.constant 0 : index
    %c0_10 = arith.constant 0 : index
    %11 = vector.load %arg5[%c0_9, %c0_10] : memref<1x512xf32, #tpu.memory_space<vmem>>, vector<1x512xf32>
    %12 = vector.broadcast %11 : vector<1x512xf32> to vector<8x512xf32>
    %13 = arith.addf %10, %12 : vector<8x512xf32>
    %cst_11 = arith.constant 0.000000e+00 : f32
    %14 = vector.broadcast %cst_11 : f32 to vector<8x512xf32>
    %15 = arith.maximumf %13, %14 : vector<8x512xf32>
    %16 = arith.truncf %15 : vector<8x512xf32> to vector<8x512xbf16>
    %c0_12 = arith.constant 0 : index
    %c0_13 = arith.constant 0 : index
    %17 = vector.load %arg6[%c0_12, %c0_13] : memref<512x256xbf16, #tpu.memory_space<vmem>>, vector<512x256xbf16>
    %cst_14 = arith.constant dense<0.000000e+00> : vector<8x256xf32>
    %18 = tpu.matmul %16, %17, %cst_14 {dimension_numbers = #tpu.dot_dimension_numbers<[1], [0], [0], [1], [0, 0, 1, 1], [], []>} : vector<8x512xbf16>, vector<512x256xbf16>, vector<8x256xf32> -> vector<8x256xf32>
    %c0_15 = arith.constant 0 : index
    %c0_16 = arith.constant 0 : index
    %19 = vector.load %arg7[%c0_15, %c0_16] : memref<1x256xf32, #tpu.memory_space<vmem>>, vector<1x256xf32>
    %20 = vector.broadcast %19 : vector<1x256xf32> to vector<8x256xf32>
    %21 = arith.addf %18, %20 : vector<8x256xf32>
    %cst_17 = arith.constant 0.000000e+00 : f32
    %22 = vector.broadcast %cst_17 : f32 to vector<8x256xf32>
    %23 = arith.maximumf %21, %22 : vector<8x256xf32>
    %24 = arith.truncf %23 : vector<8x256xf32> to vector<8x256xbf16>
    %c0_18 = arith.constant 0 : index
    %c0_19 = arith.constant 0 : index
    %25 = vector.load %arg8[%c0_18, %c0_19] : memref<256x64xbf16, #tpu.memory_space<vmem>>, vector<256x64xbf16>
    %cst_20 = arith.constant dense<0.000000e+00> : vector<8x64xf32>
    %26 = tpu.matmul %24, %25, %cst_20 {dimension_numbers = #tpu.dot_dimension_numbers<[1], [0], [0], [1], [0, 0, 1, 1], [], []>} : vector<8x256xbf16>, vector<256x64xbf16>, vector<8x64xf32> -> vector<8x64xf32>
    %c0_21 = arith.constant 0 : index
    %c0_22 = arith.constant 0 : index
    %27 = vector.load %arg9[%c0_21, %c0_22] : memref<1x64xf32, #tpu.memory_space<vmem>>, vector<1x64xf32>
    %28 = vector.broadcast %27 : vector<1x64xf32> to vector<8x64xf32>
    %29 = arith.addf %26, %28 : vector<8x64xf32>
    %cst_23 = arith.constant 0.000000e+00 : f32
    %30 = vector.broadcast %cst_23 : f32 to vector<8x64xf32>
    %31 = arith.maximumf %29, %30 : vector<8x64xf32>
    %32 = arith.truncf %31 : vector<8x64xf32> to vector<8x64xbf16>
    %c0_24 = arith.constant 0 : index
    %c0_25 = arith.constant 0 : index
    %33 = vector.load %arg10[%c0_24, %c0_25] : memref<64x16xbf16, #tpu.memory_space<vmem>>, vector<64x16xbf16>
    %cst_26 = arith.constant dense<0.000000e+00> : vector<8x16xf32>
    %34 = tpu.matmul %32, %33, %cst_26 {dimension_numbers = #tpu.dot_dimension_numbers<[1], [0], [0], [1], [0, 0, 1, 1], [], []>} : vector<8x64xbf16>, vector<64x16xbf16>, vector<8x16xf32> -> vector<8x16xf32>
    %c0_27 = arith.constant 0 : index
    %c0_28 = arith.constant 0 : index
    %35 = vector.load %arg11[%c0_27, %c0_28] : memref<1x16xf32, #tpu.memory_space<vmem>>, vector<1x16xf32>
    %36 = vector.broadcast %35 : vector<1x16xf32> to vector<8x16xf32>
    %37 = arith.addf %34, %36 : vector<8x16xf32>
    %cst_29 = arith.constant 0.000000e+00 : f32
    %38 = vector.broadcast %cst_29 : f32 to vector<8x16xf32>
    %39 = arith.maximumf %37, %38 : vector<8x16xf32>
    %40 = arith.truncf %39 : vector<8x16xf32> to vector<8x16xbf16>
    %c0_30 = arith.constant 0 : index
    %c0_31 = arith.constant 0 : index
    %41 = vector.load %arg12[%c0_30, %c0_31] : memref<16x128xbf16, #tpu.memory_space<vmem>>, vector<16x128xbf16>
    %cst_32 = arith.constant dense<0.000000e+00> : vector<8x128xf32>
    %42 = tpu.matmul %40, %41, %cst_32 {dimension_numbers = #tpu.dot_dimension_numbers<[1], [0], [0], [1], [0, 0, 1, 1], [], []>} : vector<8x16xbf16>, vector<16x128xbf16>, vector<8x128xf32> -> vector<8x128xf32>
    %c0_33 = arith.constant 0 : index
    %c0_34 = arith.constant 0 : index
    %43 = vector.load %arg13[%c0_33, %c0_34] : memref<1x128xf32, #tpu.memory_space<vmem>>, vector<1x128xf32>
    %44 = vector.broadcast %43 : vector<1x128xf32> to vector<8x128xf32>
    %45 = arith.addf %42, %44 : vector<8x128xf32>
    %c0_35 = arith.constant 0 : index
    %c0_36 = arith.constant 0 : index
    %46 = vector.load %arg14[%c0_35, %c0_36] : memref<8x128xf32, #tpu.memory_space<vmem>>, vector<8x128xf32>
    tpu.vector_store %arg14[%c0_35, %c0_36], %45 {strides = array<i32>} : memref<8x128xf32, #tpu.memory_space<vmem>>, vector<8x128xf32>,
    return
  }
  func.func @transform_0(%arg0: i32) -> (i32, i32) {
    %c0_i32 = arith.constant 0 : i32
    %c0_i32_0 = arith.constant 0 : i32
    return %arg0, %c0_i32 : i32, i32
  }
  func.func @transform_1(%arg0: i32) -> (i32, i32) {
    %c0_i32 = arith.constant 0 : i32
    %c0_i32_0 = arith.constant 0 : i32
    %c0_i32_1 = arith.constant 0 : i32
    return %c0_i32, %c0_i32_0 : i32, i32
  }
  func.func @transform_2(%arg0: i32) -> (i32, i32) {
    %c0_i32 = arith.constant 0 : i32
    %c0_i32_0 = arith.constant 0 : i32
    %c0_i32_1 = arith.constant 0 : i32
    return %c0_i32, %c0_i32_0 : i32, i32
  }
  func.func @transform_3(%arg0: i32) -> (i32, i32) {
    %c0_i32 = arith.constant 0 : i32
    %c0_i32_0 = arith.constant 0 : i32
    %c0_i32_1 = arith.constant 0 : i32
    return %c0_i32, %c0_i32_0 : i32, i32
  }
  func.func @transform_4(%arg0: i32) -> (i32, i32) {
    %c0_i32 = arith.constant 0 : i32
    %c0_i32_0 = arith.constant 0 : i32
    %c0_i32_1 = arith.constant 0 : i32
    return %c0_i32, %c0_i32_0 : i32, i32
  }
  func.func @transform_5(%arg0: i32) -> (i32, i32) {
    %c0_i32 = arith.constant 0 : i32
    %c0_i32_0 = arith.constant 0 : i32
    %c0_i32_1 = arith.constant 0 : i32
    return %c0_i32, %c0_i32_0 : i32, i32
  }
  func.func @transform_6(%arg0: i32) -> (i32, i32) {
    %c0_i32 = arith.constant 0 : i32
    %c0_i32_0 = arith.constant 0 : i32
    %c0_i32_1 = arith.constant 0 : i32
    return %c0_i32, %c0_i32_0 : i32, i32
  }
  func.func @transform_7(%arg0: i32) -> (i32, i32) {
    %c0_i32 = arith.constant 0 : i32
    %c0_i32_0 = arith.constant 0 : i32
    %c0_i32_1 = arith.constant 0 : i32
    return %c0_i32, %c0_i32_0 : i32, i32
  }
  func.func @transform_8(%arg0: i32) -> (i32, i32) {
    %c0_i32 = arith.constant 0 : i32
    %c0_i32_0 = arith.constant 0 : i32
    %c0_i32_1 = arith.constant 0 : i32
    return %c0_i32, %c0_i32_0 : i32, i32
  }
  func.func @transform_9(%arg0: i32) -> (i32, i32) {
    %c0_i32 = arith.constant 0 : i32
    %c0_i32_0 = arith.constant 0 : i32
    %c0_i32_1 = arith.constant 0 : i32
    return %c0_i32, %c0_i32_0 : i32, i32
  }
  func.func @transform_10(%arg0: i32) -> (i32, i32) {
    %c0_i32 = arith.constant 0 : i32
    %c0_i32_0 = arith.constant 0 : i32
    %c0_i32_1 = arith.constant 0 : i32
    return %c0_i32, %c0_i32_0 : i32, i32
  }
  func.func @transform_11(%arg0: i32) -> (i32, i32) {
    %c0_i32 = arith.constant 0 : i32
    %c0_i32_0 = arith.constant 0 : i32
    %c0_i32_1 = arith.constant 0 : i32
    return %c0_i32, %c0_i32_0 : i32, i32
  }
  func.func @transform_12(%arg0: i32) -> (i32, i32) {
    %c0_i32 = arith.constant 0 : i32
    %c0_i32_0 = arith.constant 0 : i32
    %c0_i32_1 = arith.constant 0 : i32
    return %c0_i32, %c0_i32_0 : i32, i32
  }
  func.func @transform_13(%arg0: i32) -> (i32, i32) {
    %c0_i32 = arith.constant 0 : i32
    %c0_i32_0 = arith.constant 0 : i32
    return %arg0, %c0_i32 : i32, i32
  }
}

</mosaic_0001>

<llo_original>
// kernel: net2506_forward.1
$region0: #{net2506_forward.1}
  #allocation0 [shape = 'u32[]', space=smem, size = 0x4, offset = 0x4, fixed_abs, tag = 'smem constant byte address 0x4 - core index']
  #allocation1 [shape = 'u32[144,128]{1,0:T(1,128)}', space=vmem, size = 0x12000, scoped, tag = 'internal scratch']
  %s0 = inlined_call_operand.vmem [shape: bf16[8,128], index: 0, kind: input, shape index: {}]
  %s1 = inlined_call_operand.vmem [shape: bf16[128,512], index: 1, kind: input, shape index: {}]
  %s2 = inlined_call_operand.hbm [shape: f32[1,512], index: 2, kind: input, shape index: {}]
  %s3 = inlined_call_operand.hbm [shape: bf16[512,512], index: 3, kind: input, shape index: {}]
  %s4 = inlined_call_operand.hbm [shape: f32[1,512], index: 4, kind: input, shape index: {}]
  %s5 = inlined_call_operand.hbm [shape: bf16[512,256], index: 5, kind: input, shape index: {}]
  %s6 = inlined_call_operand.vmem [shape: f32[1,256], index: 6, kind: input, shape index: {}]
  %s7 = inlined_call_operand.vmem [shape: bf16[256,64], index: 7, kind: input, shape index: {}]
  %s8 = inlined_call_operand.vmem [shape: f32[1,64], index: 8, kind: input, shape index: {}]
  %s9 = inlined_call_operand.vmem [shape: bf16[64,16], index: 9, kind: input, shape index: {}]
  %s10 = inlined_call_operand.vmem [shape: f32[1,16], index: 10, kind: input, shape index: {}]
  %s11 = inlined_call_operand.vmem [shape: bf16[16,128], index: 11, kind: input, shape index: {}]
  %s12 = inlined_call_operand.vmem [shape: f32[1,128], index: 12, kind: input, shape index: {}]
  %s13 = inlined_call_operand.vmem [shape: f32[8,128], index: 13, kind: output, shape index: {}]
  %s14 = sld [smem:[#allocation0]]
  $region78: #{net2506_forward.1} parent=0
    _
  %s16 = ssub.s32 1, %s14
  %s17 = scalar_select 0, %s16, %s14
  $region1: #{net2506_forward.1} parent=0
    #allocation2 [shape = 'u8[2048]{0}', space=vmem, size = 0x800, scoped, tag = 'input window, operand 2, single buffered']
    #allocation3 [shape = 's32[1]{0}', space=sflag, size = 0x4, scoped, tag = 'scoped memory for net2506_forward.1']
    #allocation4 [shape = 'u8[524288]{0}', space=vmem, size = 0x80000, scoped, tag = 'input window, operand 3, single buffered']
    #allocation5 [shape = 's32[1]{0}', space=sflag, size = 0x4, scoped, tag = 'scoped memory for net2506_forward.1']
    #allocation6 [shape = 'u8[2048]{0}', space=vmem, size = 0x800, scoped, tag = 'input window, operand 4, single buffered']
    #allocation7 [shape = 'u8[262144]{0}', space=vmem, size = 0x40000, scoped, tag = 'input window, operand 5, single buffered']
    #allocation8 [shape = 's32[1]{0}', space=sflag, size = 0x4, scoped, tag = 'scoped memory for net2506_forward.1']
    %18 = vsyncpa [#allocation3], 0
    %19 = vsyncpa [#allocation5], 0
    %20 = vsyncpa [#allocation8], 0
    // Predicated region
    $region2: #{net2506_forward.1} parent=1 // pred_check
      _
    $region3: #{net2506_forward.1} parent=1 // pred_check_branch
      %22 = sbr.rel (0) target = $region5
    $region4: #{net2506_forward.1} parent=1 // pred_region
      _
    $region5: #{net2506_forward.1} parent=1 // pred_fallthru
      _
    // Predicated region
    $region6: #{net2506_forward.1} parent=1 // pred_check
      _
    $region7: #{net2506_forward.1} parent=1 // pred_check_branch
      %24 = sbr.rel (0) target = $region9
    $region8: #{net2506_forward.1} parent=1 // pred_region
      _
    $region9: #{net2506_forward.1} parent=1 // pred_fallthru
      _
    // Predicated region
    $region10: #{net2506_forward.1} parent=1 // pred_check
      _
    $region11: #{net2506_forward.1} parent=1 // pred_check_branch
      %26 = sbr.rel (0) target = $region13
    $region12: #{net2506_forward.1} parent=1 // pred_region
      %s28 = ssub.s32 64, 64
      %29 = vsyncadd [#allocation3], %s28
      %s31 = sshll.u32 [#allocation2], 4
      %s32 = int_to_ptr.vmem [resolvable:$true] %s31
      %34 = dma.hbm_to_vmem [thread:$0]  %s2, 64, %s32, [#allocation3]
    $region13: #{net2506_forward.1} parent=1 // pred_fallthru
      _
    // Predicated region
    $region14: #{net2506_forward.1} parent=1 // pred_check
      _
    $region15: #{net2506_forward.1} parent=1 // pred_check_branch
      %36 = sbr.rel (0) target = $region17
    $region16: #{net2506_forward.1} parent=1 // pred_region
      %s38 = ssub.s32 16384, 16384
      %39 = vsyncadd [#allocation5], %s38
      %s40 = sshll.u32 [#allocation4], 4
      %s41 = int_to_ptr.vmem [resolvable:$true] %s40
      %46 = dma.hbm_to_vmem [thread:$0]  %s3, 16384, %s41, [#allocation5], 256, 256, 16
    $region17: #{net2506_forward.1} parent=1 // pred_fallthru
      _
    // Predicated region
    $region18: #{net2506_forward.1} parent=1 // pred_check
      _
    $region19: #{net2506_forward.1} parent=1 // pred_check_branch
      %48 = sbr.rel (0) target = $region21
    $region20: #{net2506_forward.1} parent=1 // pred_region
      %s50 = ssub.s32 64, 64
      %51 = vsyncadd [#allocation5], %s50
      %s53 = sshll.u32 [#allocation6], 4
      %s54 = int_to_ptr.vmem [resolvable:$true] %s53
      %56 = dma.hbm_to_vmem [thread:$0]  %s4, 64, %s54, [#allocation5]
    $region21: #{net2506_forward.1} parent=1 // pred_fallthru
      _
    // Predicated region
    $region22: #{net2506_forward.1} parent=1 // pred_check
      _
    $region23: #{net2506_forward.1} parent=1 // pred_check_branch
      %58 = sbr.rel (0) target = $region25
    $region24: #{net2506_forward.1} parent=1 // pred_region
      %s60 = ssub.s32 8192, 8192
      %61 = vsyncadd [#allocation8], %s60
      %s62 = sshll.u32 [#allocation7], 4
      %s63 = int_to_ptr.vmem [resolvable:$true] %s62
      %68 = dma.hbm_to_vmem [thread:$0]  %s5, 8192, %s63, [#allocation8], 128, 128, 8
    $region25: #{net2506_forward.1} parent=1 // pred_fallthru
      _
    // Predicated region
    $region26: #{net2506_forward.1} parent=1 // pred_check
      _
    $region27: #{net2506_forward.1} parent=1 // pred_check_branch
      %70 = sbr.rel (0) target = $region29
    $region28: #{net2506_forward.1} parent=1 // pred_region
      _
    $region29: #{net2506_forward.1} parent=1 // pred_fallthru
      _
    // Predicated region
    $region30: #{net2506_forward.1} parent=1 // pred_check
      _
    $region31: #{net2506_forward.1} parent=1 // pred_check_branch
      %72 = sbr.rel (0) target = $region33
    $region32: #{net2506_forward.1} parent=1 // pred_region
      _
    $region33: #{net2506_forward.1} parent=1 // pred_fallthru
      _
    // Predicated region
    $region34: #{net2506_forward.1} parent=1 // pred_check
      _
    $region35: #{net2506_forward.1} parent=1 // pred_check_branch
      %74 = sbr.rel (0) target = $region37
    $region36: #{net2506_forward.1} parent=1 // pred_region
      _
    $region37: #{net2506_forward.1} parent=1 // pred_fallthru
      _
    // Predicated region
    $region38: #{net2506_forward.1} parent=1 // pred_check
      _
    $region39: #{net2506_forward.1} parent=1 // pred_check_branch
      %76 = sbr.rel (0) target = $region41
    $region40: #{net2506_forward.1} parent=1 // pred_region
      _
    $region41: #{net2506_forward.1} parent=1 // pred_fallthru
      _
    // Predicated region
    $region42: #{net2506_forward.1} parent=1 // pred_check
      _
    $region43: #{net2506_forward.1} parent=1 // pred_check_branch
      %78 = sbr.rel (0) target = $region45
    $region44: #{net2506_forward.1} parent=1 // pred_region
      _
    $region45: #{net2506_forward.1} parent=1 // pred_fallthru
      _
    // Predicated region
    $region46: #{net2506_forward.1} parent=1 // pred_check
      _
    $region47: #{net2506_forward.1} parent=1 // pred_check_branch
      %80 = sbr.rel (0) target = $region49
    $region48: #{net2506_forward.1} parent=1 // pred_region
      _
    $region49: #{net2506_forward.1} parent=1 // pred_fallthru
      _
    // Predicated region
    $region50: #{net2506_forward.1} parent=1 // pred_check
      _
    $region51: #{net2506_forward.1} parent=1 // pred_check_branch
      %82 = sbr.rel (0) target = $region53
    $region52: #{net2506_forward.1} parent=1 // pred_region
      _
    $region53: #{net2506_forward.1} parent=1 // pred_fallthru
      _
    // Predicated region
    $region54: #{net2506_forward.1} parent=1 // pred_check
      _
    $region55: #{net2506_forward.1} parent=1 // pred_check_branch
      %84 = sbr.rel (0) target = $region57
    $region56: #{net2506_forward.1} parent=1 // pred_region
      %85 = dma.done [#allocation3], 64
    $region57: #{net2506_forward.1} parent=1 // pred_fallthru
      _
    // Predicated region
    $region58: #{net2506_forward.1} parent=1 // pred_check
      _
    $region59: #{net2506_forward.1} parent=1 // pred_check_branch
      %87 = sbr.rel (0) target = $region61
    $region60: #{net2506_forward.1} parent=1 // pred_region
      %88 = dma.done [#allocation5], 16384
    $region61: #{net2506_forward.1} parent=1 // pred_fallthru
      _
    // Predicated region
    $region62: #{net2506_forward.1} parent=1 // pred_check
      _
    $region63: #{net2506_forward.1} parent=1 // pred_check_branch
      %90 = sbr.rel (0) target = $region65
    $region64: #{net2506_forward.1} parent=1 // pred_region
      %91 = dma.done [#allocation5], 64
    $region65: #{net2506_forward.1} parent=1 // pred_fallthru
      _
    // Predicated region
    $region66: #{net2506_forward.1} parent=1 // pred_check
      _
    $region67: #{net2506_forward.1} parent=1 // pred_check_branch
      %93 = sbr.rel (0) target = $region69
    $region68: #{net2506_forward.1} parent=1 // pred_region
      %94 = dma.done [#allocation8], 8192
    $region69: #{net2506_forward.1} parent=1 // pred_fallthru
      _
    %v96 = vld [vmem:[%s0] sm:$0xf]
    %v97 = vld [vmem:[%s1] sm:$0xff]
    %v98 = vld [vmem:[%s1 + $0x8] sm:$0xff]
    %v99 = vld [vmem:[%s1 + $0x10] sm:$0xff]
    %v100 = vld [vmem:[%s1 + $0x18] sm:$0xff]
    %v101 = vld [vmem:[%s1 + $0x20] sm:$0xff]
    %v102 = vld [vmem:[%s1 + $0x28] sm:$0xff]
    %v103 = vld [vmem:[%s1 + $0x30] sm:$0xff]
    %v104 = vld [vmem:[%s1 + $0x38] sm:$0xff]
    %v105 = vld [vmem:[%s1 + $0x40] sm:$0xff]
    %v106 = vld [vmem:[%s1 + $0x48] sm:$0xff]
    %v107 = vld [vmem:[%s1 + $0x50] sm:$0xff]
    %v108 = vld [vmem:[%s1 + $0x58] sm:$0xff]
    %v109 = vld [vmem:[%s1 + $0x60] sm:$0xff]
    %v110 = vld [vmem:[%s1 + $0x68] sm:$0xff]
    %v111 = vld [vmem:[%s1 + $0x70] sm:$0xff]
    %v112 = vld [vmem:[%s1 + $0x78] sm:$0xff]
    %v113 = vld [vmem:[%s1 + $0x80] sm:$0xff]
    %v114 = vld [vmem:[%s1 + $0x88] sm:$0xff]
    %v115 = vld [vmem:[%s1 + $0x90] sm:$0xff]
    %v116 = vld [vmem:[%s1 + $0x98] sm:$0xff]
    %v117 = vld [vmem:[%s1 + $0xa0] sm:$0xff]
    %v118 = vld [vmem:[%s1 + $0xa8] sm:$0xff]
    %v119 = vld [vmem:[%s1 + $0xb0] sm:$0xff]
    %v120 = vld [vmem:[%s1 + $0xb8] sm:$0xff]
    %v121 = vld [vmem:[%s1 + $0xc0] sm:$0xff]
    %v122 = vld [vmem:[%s1 + $0xc8] sm:$0xff]
    %v123 = vld [vmem:[%s1 + $0xd0] sm:$0xff]
    %v124 = vld [vmem:[%s1 + $0xd8] sm:$0xff]
    %v125 = vld [vmem:[%s1 + $0xe0] sm:$0xff]
    %v126 = vld [vmem:[%s1 + $0xe8] sm:$0xff]
    %v127 = vld [vmem:[%s1 + $0xf0] sm:$0xff]
    %v128 = vld [vmem:[%s1 + $0xf8] sm:$0xff]
    %v129 = vld [vmem:[#allocation2] sm:$0xf]
    %v131 = vlaneseq
    %v132 = vshrl.u32 %v131, 7
    %v133 = vsub.s32 0, %v132
    %v134 = vrot.slane %v129, %v133
    %v135 = vlaneseq
    %v136 = vshrl.u32 %v135, 7
    %v137 = vsub.s32 1, %v136
    %v138 = vrot.slane %v129, %v137
    %v139 = vlaneseq
    %v140 = vshrl.u32 %v139, 7
    %v141 = vsub.s32 2, %v140
    %v142 = vrot.slane %v129, %v141
    %v143 = vlaneseq
    %v144 = vshrl.u32 %v143, 7
    %v145 = vsub.s32 3, %v144
    %v146 = vrot.slane %v129, %v145
    %v183 = vunpack.c.l.b16 %v97
    %v184 = vunpack.c.h.b16 %v97
    %v185 = vunpack.c.l.b16 %v98
    %v186 = vunpack.c.h.b16 %v98
    %v187 = vunpack.c.l.b16 %v99
    %v188 = vunpack.c.h.b16 %v99
    %v189 = vunpack.c.l.b16 %v100
    %v190 = vunpack.c.h.b16 %v100
    %v191 = vunpack.c.l.b16 %v101
    %v192 = vunpack.c.h.b16 %v101
    %v193 = vunpack.c.l.b16 %v102
    %v194 = vunpack.c.h.b16 %v102
    %v195 = vunpack.c.l.b16 %v103
    %v196 = vunpack.c.h.b16 %v103
    %v197 = vunpack.c.l.b16 %v104
    %v198 = vunpack.c.h.b16 %v104
    %v199 = vunpack.c.l.b16 %v105
    %v200 = vunpack.c.h.b16 %v105
    %v201 = vunpack.c.l.b16 %v106
    %v202 = vunpack.c.h.b16 %v106
    %v203 = vunpack.c.l.b16 %v107
    %v204 = vunpack.c.h.b16 %v107
    %v205 = vunpack.c.l.b16 %v108
    %v206 = vunpack.c.h.b16 %v108
    %v207 = vunpack.c.l.b16 %v109
    %v208 = vunpack.c.h.b16 %v109
    %v209 = vunpack.c.l.b16 %v110
    %v210 = vunpack.c.h.b16 %v110
    %v211 = vunpack.c.l.b16 %v111
    %v212 = vunpack.c.h.b16 %v111
    %v213 = vunpack.c.l.b16 %v112
    %v214 = vunpack.c.h.b16 %v112
    %v215 = vunpack.c.l.b16 %v113
    %v216 = vunpack.c.h.b16 %v113
    %v217 = vunpack.c.l.b16 %v114
    %v218 = vunpack.c.h.b16 %v114
    %v219 = vunpack.c.l.b16 %v115
    %v220 = vunpack.c.h.b16 %v115
    %v221 = vunpack.c.l.b16 %v116
    %v222 = vunpack.c.h.b16 %v116
    %v223 = vunpack.c.l.b16 %v117
    %v224 = vunpack.c.h.b16 %v117
    %v225 = vunpack.c.l.b16 %v118
    %v226 = vunpack.c.h.b16 %v118
    %v227 = vunpack.c.l.b16 %v119
    %v228 = vunpack.c.h.b16 %v119
    %v229 = vunpack.c.l.b16 %v120
    %v230 = vunpack.c.h.b16 %v120
    %v231 = vunpack.c.l.b16 %v121
    %v232 = vunpack.c.h.b16 %v121
    %v233 = vunpack.c.l.b16 %v122
    %v234 = vunpack.c.h.b16 %v122
    %v235 = vunpack.c.l.b16 %v123
    %v236 = vunpack.c.h.b16 %v123
    %v237 = vunpack.c.l.b16 %v124
    %v238 = vunpack.c.h.b16 %v124
    %v239 = vunpack.c.l.b16 %v125
    %v240 = vunpack.c.h.b16 %v125
    %v241 = vunpack.c.l.b16 %v126
    %v242 = vunpack.c.h.b16 %v126
    %v243 = vunpack.c.l.b16 %v127
    %v244 = vunpack.c.h.b16 %v127
    %v245 = vunpack.c.l.b16 %v128
    %v246 = vunpack.c.h.b16 %v128
    %v247 = vpack.c.b16 %v187, %v183
    %v248 = vpack.c.b16 %v188, %v184
    %v249 = vpack.c.b16 %v189, %v185
    %v250 = vpack.c.b16 %v190, %v186
    %v251 = vpack.c.b16 %v195, %v191
    %v252 = vpack.c.b16 %v196, %v192
    %v253 = vpack.c.b16 %v197, %v193
    %v254 = vpack.c.b16 %v198, %v194
    %v255 = vpack.c.b16 %v203, %v199
    %v256 = vpack.c.b16 %v204, %v200
    %v257 = vpack.c.b16 %v205, %v201
    %v258 = vpack.c.b16 %v206, %v202
    %v259 = vpack.c.b16 %v211, %v207
    %v260 = vpack.c.b16 %v212, %v208
    %v261 = vpack.c.b16 %v213, %v209
    %v262 = vpack.c.b16 %v214, %v210
    %v263 = vpack.c.b16 %v219, %v215
    %v264 = vpack.c.b16 %v220, %v216
    %v265 = vpack.c.b16 %v221, %v217
    %v266 = vpack.c.b16 %v222, %v218
    %v267 = vpack.c.b16 %v227, %v223
    %v268 = vpack.c.b16 %v228, %v224
    %v269 = vpack.c.b16 %v229, %v225
    %v270 = vpack.c.b16 %v230, %v226
    %v271 = vpack.c.b16 %v235, %v231
    %v272 = vpack.c.b16 %v236, %v232
    %v273 = vpack.c.b16 %v237, %v233
    %v274 = vpack.c.b16 %v238, %v234
    %v275 = vpack.c.b16 %v243, %v239
    %v276 = vpack.c.b16 %v244, %v240
    %v277 = vpack.c.b16 %v245, %v241
    %v278 = vpack.c.b16 %v246, %v242
    %311 = vmatprep.subr.bf16.mxu0 %v248
    %312 = vmatpush1.bf16.msra.mxu0 %v247
    %313 = vmatprep.subr.bf16.mxu0 %v252
    %314 = vmatpush1.bf16.msra.mxu0 %v251
    %315 = vmatprep.subr.bf16.mxu0 %v256
    %316 = vmatpush1.bf16.msra.mxu0 %v255
    %317 = vmatprep.subr.bf16.mxu0 %v260
    %318 = vmatpush1.bf16.msra.mxu0 %v259
    %319 = vmatprep.subr.bf16.mxu0 %v264
    %320 = vmatpush1.bf16.msra.mxu0 %v263
    %321 = vmatprep.subr.bf16.mxu0 %v268
    %322 = vmatpush1.bf16.msra.mxu0 %v267
    %323 = vmatprep.subr.bf16.mxu0 %v272
    %324 = vmatpush1.bf16.msra.mxu0 %v271
    %325 = vmatprep.subr.bf16.mxu0 %v276
    %326 = vmatpush1.bf16.msra.mxu0 %v275
    %327 = vmatprep.subr.bf16.mxu0 0
    %328 = vmatpush1.bf16.msra.mxu0 0
    %329 = vmatprep.subr.bf16.mxu0 0
    %330 = vmatpush1.bf16.msra.mxu0 0
    %331 = vmatprep.subr.bf16.mxu0 0
    %332 = vmatpush1.bf16.msra.mxu0 0
    %333 = vmatprep.subr.bf16.mxu0 0
    %334 = vmatpush1.bf16.msra.mxu0 0
    %335 = vmatprep.subr.bf16.mxu0 0
    %336 = vmatpush1.bf16.msra.mxu0 0
    %337 = vmatprep.subr.bf16.mxu0 0
    %338 = vmatpush1.bf16.msra.mxu0 0
    %339 = vmatprep.subr.bf16.mxu0 0
    %340 = vmatpush1.bf16.msra.mxu0 0
    %341 = vmatprep.subr.bf16.mxu0 0
    %342 = vmatpush1.bf16.msra.mxu0 0
    %343 = vmatprep.mubr.bf16.mxu0 0
    %344 = vmatmul.mubr.bf16.gmra.mrb[0].mxu0 %v96
    %v345 = vpop.f32.mrb[0].mxu0
    %v346 = vadd.f32 %v134, %v345
    %v347 = vpop.f32.mrb[0].mxu0
    %v348 = vadd.f32 %v138, %v347
    %v349 = vpop.f32.mrb[0].mxu0
    %v350 = vpop.f32.mrb[0].mxu0
    %351 = vdwg.mxu0
    %352 = vmatprep.subr.bf16.mxu0 %v250
    %353 = vmatpush1.bf16.msra.mxu0 %v249
    %354 = vmatprep.subr.bf16.mxu0 %v254
    %355 = vmatpush1.bf16.msra.mxu0 %v253
    %356 = vmatprep.subr.bf16.mxu0 %v258
    %357 = vmatpush1.bf16.msra.mxu0 %v257
    %358 = vmatprep.subr.bf16.mxu0 %v262
    %359 = vmatpush1.bf16.msra.mxu0 %v261
    %360 = vmatprep.subr.bf16.mxu0 %v266
    %361 = vmatpush1.bf16.msra.mxu0 %v265
    %362 = vmatprep.subr.bf16.mxu0 %v270
    %363 = vmatpush1.bf16.msra.mxu0 %v269
    %364 = vmatprep.subr.bf16.mxu0 %v274
    %365 = vmatpush1.bf16.msra.mxu0 %v273
    %366 = vmatprep.subr.bf16.mxu0 %v278
    %367 = vmatpush1.bf16.msra.mxu0 %v277
    %368 = vmatprep.subr.bf16.mxu0 0
    %369 = vmatpush1.bf16.msra.mxu0 0
    %370 = vmatprep.subr.bf16.mxu0 0
    %371 = vmatpush1.bf16.msra.mxu0 0
    %372 = vmatprep.subr.bf16.mxu0 0
    %373 = vmatpush1.bf16.msra.mxu0 0
    %374 = vmatprep.subr.bf16.mxu0 0
    %375 = vmatpush1.bf16.msra.mxu0 0
    %376 = vmatprep.subr.bf16.mxu0 0
    %377 = vmatpush1.bf16.msra.mxu0 0
    %378 = vmatprep.subr.bf16.mxu0 0
    %379 = vmatpush1.bf16.msra.mxu0 0
    %380 = vmatprep.subr.bf16.mxu0 0
    %381 = vmatpush1.bf16.msra.mxu0 0
    %382 = vmatprep.subr.bf16.mxu0 0
    %383 = vmatpush1.bf16.msra.mxu0 0
    %384 = vmatprep.mubr.bf16.mxu0 0
    %385 = vmatmul.mubr.bf16.gmra.mrb[0].mxu0 %v96
    %v386 = vpop.f32.mrb[0].mxu0
    %v387 = vadd.f32 %v142, %v386
    %v388 = vpop.f32.mrb[0].mxu0
    %v389 = vadd.f32 %v146, %v388
    %v390 = vpop.f32.mrb[0].mxu0
    %v391 = vpop.f32.mrb[0].mxu0
    %392 = vdwg.mxu0
    %v393 = vmax.f32 %v346, 0.0
    %v394 = vmax.f32 %v348, 0.0
    %v395 = vmax.f32 %v387, 0.0
    %v396 = vmax.f32 %v389, 0.0
    %v397 = vpack.c.bf16 %v393, %v393
    %v398 = vpack.c.bf16 %v394, %v394
    %v399 = vpack.c.bf16 %v395, %v395
    %v400 = vpack.c.bf16 %v396, %v396
    %v401 = vld [vmem:[#allocation4] sm:$0xff]
    %v402 = vld [vmem:[#allocation4 + $0x8] sm:$0xff]
    %v403 = vld [vmem:[#allocation4 + $0x10] sm:$0xff]
    %v404 = vld [vmem:[#allocation4 + $0x18] sm:$0xff]
    %v405 = vld [vmem:[#allocation4 + $0x20] sm:$0xff]
    %v406 = vld [vmem:[#allocation4 + $0x28] sm:$0xff]
    %v407 = vld [vmem:[#allocation4 + $0x30] sm:$0xff]
    %v408 = vld [vmem:[#allocation4 + $0x38] sm:$0xff]
    %v409 = vld [vmem:[#allocation4 + $0x40] sm:$0xff]
    %v410 = vld [vmem:[#allocation4 + $0x48] sm:$0xff]
    %v411 = vld [vmem:[#allocation4 + $0x50] sm:$0xff]
    %v412 = vld [vmem:[#allocation4 + $0x58] sm:$0xff]
    %v413 = vld [vmem:[#allocation4 + $0x60] sm:$0xff]
    %v414 = vld [vmem:[#allocation4 + $0x68] sm:$0xff]
    %v415 = vld [vmem:[#allocation4 + $0x70] sm:$0xff]
    %v416 = vld [vmem:[#allocation4 + $0x78] sm:$0xff]
    %v417 = vld [vmem:[#allocation4 + $0x80] sm:$0xff]
    %v418 = vld [vmem:[#allocation4 + $0x88] sm:$0xff]
    %v419 = vld [vmem:[#allocation4 + $0x90] sm:$0xff]
    %v420 = vld [vmem:[#allocation4 + $0x98] sm:$0xff]
    %v421 = vld [vmem:[#allocation4 + $0xa0] sm:$0xff]
    %v422 = vld [vmem:[#allocation4 + $0xa8] sm:$0xff]
    %v423 = vld [vmem:[#allocation4 + $0xb0] sm:$0xff]
    %v424 = vld [vmem:[#allocation4 + $0xb8] sm:$0xff]
    %v425 = vld [vmem:[#allocation4 + $0xc0] sm:$0xff]
    %v426 = vld [vmem:[#allocation4 + $0xc8] sm:$0xff]
    %v427 = vld [vmem:[#allocation4 + $0xd0] sm:$0xff]
    %v428 = vld [vmem:[#allocation4 + $0xd8] sm:$0xff]
    %v429 = vld [vmem:[#allocation4 + $0xe0] sm:$0xff]
    %v430 = vld [vmem:[#allocation4 + $0xe8] sm:$0xff]
    %v431 = vld [vmem:[#allocation4 + $0xf0] sm:$0xff]
    %v432 = vld [vmem:[#allocation4 + $0xf8] sm:$0xff]
    %v433 = vld [vmem:[#allocation4 + $0x100] sm:$0xff]
    %v434 = vld [vmem:[#allocation4 + $0x108] sm:$0xff]
    %v435 = vld [vmem:[#allocation4 + $0x110] sm:$0xff]
    %v436 = vld [vmem:[#allocation4 + $0x118] sm:$0xff]
    %v437 = vld [vmem:[#allocation4 + $0x120] sm:$0xff]
    %v438 = vld [vmem:[#allocation4 + $0x128] sm:$0xff]
    %v439 = vld [vmem:[#allocation4 + $0x130] sm:$0xff]
    %v440 = vld [vmem:[#allocation4 + $0x138] sm:$0xff]
    %v441 = vld [vmem:[#allocation4 + $0x140] sm:$0xff]
    %v442 = vld [vmem:[#allocation4 + $0x148] sm:$0xff]
    %v443 = vld [vmem:[#allocation4 + $0x150] sm:$0xff]
    %v444 = vld [vmem:[#allocation4 + $0x158] sm:$0xff]
    %v445 = vld [vmem:[#allocation4 + $0x160] sm:$0xff]
    %v446 = vld [vmem:[#allocation4 + $0x168] sm:$0xff]
    %v447 = vld [vmem:[#allocation4 + $0x170] sm:$0xff]
    %v448 = vld [vmem:[#allocation4 + $0x178] sm:$0xff]
    %v449 = vld [vmem:[#allocation4 + $0x180] sm:$0xff]
    %v450 = vld [vmem:[#allocation4 + $0x188] sm:$0xff]
    %v451 = vld [vmem:[#allocation4 + $0x190] sm:$0xff]
    %v452 = vld [vmem:[#allocation4 + $0x198] sm:$0xff]
    %v453 = vld [vmem:[#allocation4 + $0x1a0] sm:$0xff]
    %v454 = vld [vmem:[#allocation4 + $0x1a8] sm:$0xff]
    %v455 = vld [vmem:[#allocation4 + $0x1b0] sm:$0xff]
    %v456 = vld [vmem:[#allocation4 + $0x1b8] sm:$0xff]
    %v457 = vld [vmem:[#allocation4 + $0x1c0] sm:$0xff]
    %v458 = vld [vmem:[#allocation4 + $0x1c8] sm:$0xff]
    %v459 = vld [vmem:[#allocation4 + $0x1d0] sm:$0xff]
    %v460 = vld [vmem:[#allocation4 + $0x1d8] sm:$0xff]
    %v461 = vld [vmem:[#allocation4 + $0x1e0] sm:$0xff]
    %v462 = vld [vmem:[#allocation4 + $0x1e8] sm:$0xff]
    %v463 = vld [vmem:[#allocation4 + $0x1f0] sm:$0xff]
    %v464 = vld [vmem:[#allocation4 + $0x1f8] sm:$0xff]
    %v465 = vld [vmem:[#allocation4 + $0x200] sm:$0xff]
    %v466 = vld [vmem:[#allocation4 + $0x208] sm:$0xff]
    %v467 = vld [vmem:[#allocation4 + $0x210] sm:$0xff]
    %v468 = vld [vmem:[#allocation4 + $0x218] sm:$0xff]
    %v469 = vld [vmem:[#allocation4 + $0x220] sm:$0xff]
    %v470 = vld [vmem:[#allocation4 + $0x228] sm:$0xff]
    %v471 = vld [vmem:[#allocation4 + $0x230] sm:$0xff]
    %v472 = vld [vmem:[#allocation4 + $0x238] sm:$0xff]
    %v473 = vld [vmem:[#allocation4 + $0x240] sm:$0xff]
    %v474 = vld [vmem:[#allocation4 + $0x248] sm:$0xff]
    %v475 = vld [vmem:[#allocation4 + $0x250] sm:$0xff]
    %v476 = vld [vmem:[#allocation4 + $0x258] sm:$0xff]
    %v477 = vld [vmem:[#allocation4 + $0x260] sm:$0xff]
    %v478 = vld [vmem:[#allocation4 + $0x268] sm:$0xff]
    %v479 = vld [vmem:[#allocation4 + $0x270] sm:$0xff]
    %v480 = vld [vmem:[#allocation4 + $0x278] sm:$0xff]
    %v481 = vld [vmem:[#allocation4 + $0x280] sm:$0xff]
    %v482 = vld [vmem:[#allocation4 + $0x288] sm:$0xff]
    %v483 = vld [vmem:[#allocation4 + $0x290] sm:$0xff]
    %v484 = vld [vmem:[#allocation4 + $0x298] sm:$0xff]
    %v485 = vld [vmem:[#allocation4 + $0x2a0] sm:$0xff]
    %v486 = vld [vmem:[#allocation4 + $0x2a8] sm:$0xff]
    %v487 = vld [vmem:[#allocation4 + $0x2b0] sm:$0xff]
    %v488 = vld [vmem:[#allocation4 + $0x2b8] sm:$0xff]
    %v489 = vld [vmem:[#allocation4 + $0x2c0] sm:$0xff]
    %v490 = vld [vmem:[#allocation4 + $0x2c8] sm:$0xff]
    %v491 = vld [vmem:[#allocation4 + $0x2d0] sm:$0xff]
    %v492 = vld [vmem:[#allocation4 + $0x2d8] sm:$0xff]
    %v493 = vld [vmem:[#allocation4 + $0x2e0] sm:$0xff]
    %v494 = vld [vmem:[#allocation4 + $0x2e8] sm:$0xff]
    %v495 = vld [vmem:[#allocation4 + $0x2f0] sm:$0xff]
    %v496 = vld [vmem:[#allocation4 + $0x2f8] sm:$0xff]
    %v497 = vld [vmem:[#allocation4 + $0x300] sm:$0xff]
    %v498 = vld [vmem:[#allocation4 + $0x308] sm:$0xff]
    %v499 = vld [vmem:[#allocation4 + $0x310] sm:$0xff]
    %v500 = vld [vmem:[#allocation4 + $0x318] sm:$0xff]
    %v501 = vld [vmem:[#allocation4 + $0x320] sm:$0xff]
    %v502 = vld [vmem:[#allocation4 + $0x328] sm:$0xff]
    %v503 = vld [vmem:[#allocation4 + $0x330] sm:$0xff]
    %v504 = vld [vmem:[#allocation4 + $0x338] sm:$0xff]
    %v505 = vld [vmem:[#allocation4 + $0x340] sm:$0xff]
    %v506 = vld [vmem:[#allocation4 + $0x348] sm:$0xff]
    %v507 = vld [vmem:[#allocation4 + $0x350] sm:$0xff]
    %v508 = vld [vmem:[#allocation4 + $0x358] sm:$0xff]
    %v509 = vld [vmem:[#allocation4 + $0x360] sm:$0xff]
    %v510 = vld [vmem:[#allocation4 + $0x368] sm:$0xff]
    %v511 = vld [vmem:[#allocation4 + $0x370] sm:$0xff]
    %v512 = vld [vmem:[#allocation4 + $0x378] sm:$0xff]
    %v513 = vld [vmem:[#allocation4 + $0x380] sm:$0xff]
    %v514 = vld [vmem:[#allocation4 + $0x388] sm:$0xff]
    %v515 = vld [vmem:[#allocation4 + $0x390] sm:$0xff]
    %v516 = vld [vmem:[#allocation4 + $0x398] sm:$0xff]
    %v517 = vld [vmem:[#allocation4 + $0x3a0] sm:$0xff]
    %v518 = vld [vmem:[#allocation4 + $0x3a8] sm:$0xff]
    %v519 = vld [vmem:[#allocation4 + $0x3b0] sm:$0xff]
    %v520 = vld [vmem:[#allocation4 + $0x3b8] sm:$0xff]
    %v521 = vld [vmem:[#allocation4 + $0x3c0] sm:$0xff]
    %v522 = vld [vmem:[#allocation4 + $0x3c8] sm:$0xff]
    %v523 = vld [vmem:[#allocation4 + $0x3d0] sm:$0xff]
    %v524 = vld [vmem:[#allocation4 + $0x3d8] sm:$0xff]
    %v525 = vld [vmem:[#allocation4 + $0x3e0] sm:$0xff]
    %v526 = vld [vmem:[#allocation4 + $0x3e8] sm:$0xff]
    %v527 = vld [vmem:[#allocation4 + $0x3f0] sm:$0xff]
    %v528 = vld [vmem:[#allocation4 + $0x3f8] sm:$0xff]
    %v529 = vld [vmem:[#allocation6] sm:$0xf]
    %v531 = vlaneseq
    %v532 = vshrl.u32 %v531, 7
    %v533 = vsub.s32 0, %v532
    %v534 = vrot.slane %v529, %v533
    %v535 = vlaneseq
    %v536 = vshrl.u32 %v535, 7
    %v537 = vsub.s32 1, %v536
    %v538 = vrot.slane %v529, %v537
    %v539 = vlaneseq
    %v540 = vshrl.u32 %v539, 7
    %v541 = vsub.s32 2, %v540
    %v542 = vrot.slane %v529, %v541
    %v543 = vlaneseq
    %v544 = vshrl.u32 %v543, 7
    %v545 = vsub.s32 3, %v544
    %v546 = vrot.slane %v529, %v545
    %v679 = vunpack.c.l.b16 %v401
    %v680 = vunpack.c.h.b16 %v401
    %v681 = vunpack.c.l.b16 %v402
    %v682 = vunpack.c.h.b16 %v402
    %v683 = vunpack.c.l.b16 %v403
    %v684 = vunpack.c.h.b16 %v403
    %v685 = vunpack.c.l.b16 %v404
    %v686 = vunpack.c.h.b16 %v404
    %v687 = vunpack.c.l.b16 %v405
    %v688 = vunpack.c.h.b16 %v405
    %v689 = vunpack.c.l.b16 %v406
    %v690 = vunpack.c.h.b16 %v406
    %v691 = vunpack.c.l.b16 %v407
    %v692 = vunpack.c.h.b16 %v407
    %v693 = vunpack.c.l.b16 %v408
    %v694 = vunpack.c.h.b16 %v408
    %v695 = vunpack.c.l.b16 %v409
    %v696 = vunpack.c.h.b16 %v409
    %v697 = vunpack.c.l.b16 %v410
    %v698 = vunpack.c.h.b16 %v410
    %v699 = vunpack.c.l.b16 %v411
    %v700 = vunpack.c.h.b16 %v411
    %v701 = vunpack.c.l.b16 %v412
    %v702 = vunpack.c.h.b16 %v412
    %v703 = vunpack.c.l.b16 %v413
    %v704 = vunpack.c.h.b16 %v413
    %v705 = vunpack.c.l.b16 %v414
    %v706 = vunpack.c.h.b16 %v414
    %v707 = vunpack.c.l.b16 %v415
    %v708 = vunpack.c.h.b16 %v415
    %v709 = vunpack.c.l.b16 %v416
    %v710 = vunpack.c.h.b16 %v416
    %v711 = vunpack.c.l.b16 %v417
    %v712 = vunpack.c.h.b16 %v417
    %v713 = vunpack.c.l.b16 %v418
    %v714 = vunpack.c.h.b16 %v418
    %v715 = vunpack.c.l.b16 %v419
    %v716 = vunpack.c.h.b16 %v419
    %v717 = vunpack.c.l.b16 %v420
    %v718 = vunpack.c.h.b16 %v420
    %v719 = vunpack.c.l.b16 %v421
    %v720 = vunpack.c.h.b16 %v421
    %v721 = vunpack.c.l.b16 %v422
    %v722 = vunpack.c.h.b16 %v422
    %v723 = vunpack.c.l.b16 %v423
    %v724 = vunpack.c.h.b16 %v423
    %v725 = vunpack.c.l.b16 %v424
    %v726 = vunpack.c.h.b16 %v424
    %v727 = vunpack.c.l.b16 %v425
    %v728 = vunpack.c.h.b16 %v425
    %v729 = vunpack.c.l.b16 %v426
    %v730 = vunpack.c.h.b16 %v426
    %v731 = vunpack.c.l.b16 %v427
    %v732 = vunpack.c.h.b16 %v427
    %v733 = vunpack.c.l.b16 %v428
    %v734 = vunpack.c.h.b16 %v428
    %v735 = vunpack.c.l.b16 %v429
    %v736 = vunpack.c.h.b16 %v429
    %v737 = vunpack.c.l.b16 %v430
    %v738 = vunpack.c.h.b16 %v430
    %v739 = vunpack.c.l.b16 %v431
    %v740 = vunpack.c.h.b16 %v431
    %v741 = vunpack.c.l.b16 %v432
    %v742 = vunpack.c.h.b16 %v432
    %v743 = vunpack.c.l.b16 %v433
    %v744 = vunpack.c.h.b16 %v433
    %v745 = vunpack.c.l.b16 %v434
    %v746 = vunpack.c.h.b16 %v434
    %v747 = vunpack.c.l.b16 %v435
    %v748 = vunpack.c.h.b16 %v435
    %v749 = vunpack.c.l.b16 %v436
    %v750 = vunpack.c.h.b16 %v436
    %v751 = vunpack.c.l.b16 %v437
    %v752 = vunpack.c.h.b16 %v437
    %v753 = vunpack.c.l.b16 %v438
    %v754 = vunpack.c.h.b16 %v438
    %v755 = vunpack.c.l.b16 %v439
    %v756 = vunpack.c.h.b16 %v439
    %v757 = vunpack.c.l.b16 %v440
    %v758 = vunpack.c.h.b16 %v440
    %v759 = vunpack.c.l.b16 %v441
    %v760 = vunpack.c.h.b16 %v441
    %v761 = vunpack.c.l.b16 %v442
    %v762 = vunpack.c.h.b16 %v442
    %v763 = vunpack.c.l.b16 %v443
    %v764 = vunpack.c.h.b16 %v443
    %v765 = vunpack.c.l.b16 %v444
    %v766 = vunpack.c.h.b16 %v444
    %v767 = vunpack.c.l.b16 %v445
    %v768 = vunpack.c.h.b16 %v445
    %v769 = vunpack.c.l.b16 %v446
    %v770 = vunpack.c.h.b16 %v446
    %v771 = vunpack.c.l.b16 %v447
    %v772 = vunpack.c.h.b16 %v447
    %v773 = vunpack.c.l.b16 %v448
    %v774 = vunpack.c.h.b16 %v448
    %v775 = vunpack.c.l.b16 %v449
    %v776 = vunpack.c.h.b16 %v449
    %v777 = vunpack.c.l.b16 %v450
    %v778 = vunpack.c.h.b16 %v450
    %v779 = vunpack.c.l.b16 %v451
    %v780 = vunpack.c.h.b16 %v451
    %v781 = vunpack.c.l.b16 %v452
    %v782 = vunpack.c.h.b16 %v452
    %v783 = vunpack.c.l.b16 %v453
    %v784 = vunpack.c.h.b16 %v453
    %v785 = vunpack.c.l.b16 %v454
    %v786 = vunpack.c.h.b16 %v454
    %v787 = vunpack.c.l.b16 %v455
    %v788 = vunpack.c.h.b16 %v455
    %v789 = vunpack.c.l.b16 %v456
    %v790 = vunpack.c.h.b16 %v456
    %v791 = vunpack.c.l.b16 %v457
    %v792 = vunpack.c.h.b16 %v457
    %v793 = vunpack.c.l.b16 %v458
    %v794 = vunpack.c.h.b16 %v458
    %v795 = vunpack.c.l.b16 %v459
    %v796 = vunpack.c.h.b16 %v459
    %v797 = vunpack.c.l.b16 %v460
    %v798 = vunpack.c.h.b16 %v460
    %v799 = vunpack.c.l.b16 %v461
    %v800 = vunpack.c.h.b16 %v461
    %v801 = vunpack.c.l.b16 %v462
    %v802 = vunpack.c.h.b16 %v462
    %v803 = vunpack.c.l.b16 %v463
    %v804 = vunpack.c.h.b16 %v463
    %v805 = vunpack.c.l.b16 %v464
    %v806 = vunpack.c.h.b16 %v464
    %v807 = vunpack.c.l.b16 %v465
    %v808 = vunpack.c.h.b16 %v465
    %v809 = vunpack.c.l.b16 %v466
    %v810 = vunpack.c.h.b16 %v466
    %v811 = vunpack.c.l.b16 %v467
    %v812 = vunpack.c.h.b16 %v467
    %v813 = vunpack.c.l.b16 %v468
    %v814 = vunpack.c.h.b16 %v468
    %v815 = vunpack.c.l.b16 %v469
    %v816 = vunpack.c.h.b16 %v469
    %v817 = vunpack.c.l.b16 %v470
    %v818 = vunpack.c.h.b16 %v470
    %v819 = vunpack.c.l.b16 %v471
    %v820 = vunpack.c.h.b16 %v471
    %v821 = vunpack.c.l.b16 %v472
    %v822 = vunpack.c.h.b16 %v472
    %v823 = vunpack.c.l.b16 %v473
    %v824 = vunpack.c.h.b16 %v473
    %v825 = vunpack.c.l.b16 %v474
    %v826 = vunpack.c.h.b16 %v474
    %v827 = vunpack.c.l.b16 %v475
    %v828 = vunpack.c.h.b16 %v475
    %v829 = vunpack.c.l.b16 %v476
    %v830 = vunpack.c.h.b16 %v476
    %v831 = vunpack.c.l.b16 %v477
    %v832 = vunpack.c.h.b16 %v477
    %v833 = vunpack.c.l.b16 %v478
    %v834 = vunpack.c.h.b16 %v478
    %v835 = vunpack.c.l.b16 %v479
    %v836 = vunpack.c.h.b16 %v479
    %v837 = vunpack.c.l.b16 %v480
    %v838 = vunpack.c.h.b16 %v480
    %v839 = vunpack.c.l.b16 %v481
    %v840 = vunpack.c.h.b16 %v481
    %v841 = vunpack.c.l.b16 %v482
    %v842 = vunpack.c.h.b16 %v482
    %v843 = vunpack.c.l.b16 %v483
    %v844 = vunpack.c.h.b16 %v483
    %v845 = vunpack.c.l.b16 %v484
    %v846 = vunpack.c.h.b16 %v484
    %v847 = vunpack.c.l.b16 %v485
    %v848 = vunpack.c.h.b16 %v485
    %v849 = vunpack.c.l.b16 %v486
    %v850 = vunpack.c.h.b16 %v486
    %v851 = vunpack.c.l.b16 %v487
    %v852 = vunpack.c.h.b16 %v487
    %v853 = vunpack.c.l.b16 %v488
    %v854 = vunpack.c.h.b16 %v488
    %v855 = vunpack.c.l.b16 %v489
    %v856 = vunpack.c.h.b16 %v489
    %v857 = vunpack.c.l.b16 %v490
    %v858 = vunpack.c.h.b16 %v490
    %v859 = vunpack.c.l.b16 %v491
    %v860 = vunpack.c.h.b16 %v491
    %v861 = vunpack.c.l.b16 %v492
    %v862 = vunpack.c.h.b16 %v492
    %v863 = vunpack.c.l.b16 %v493
    %v864 = vunpack.c.h.b16 %v493
    %v865 = vunpack.c.l.b16 %v494
    %v866 = vunpack.c.h.b16 %v494
    %v867 = vunpack.c.l.b16 %v495
    %v868 = vunpack.c.h.b16 %v495
    %v869 = vunpack.c.l.b16 %v496
    %v870 = vunpack.c.h.b16 %v496
    %v871 = vunpack.c.l.b16 %v497
    %v872 = vunpack.c.h.b16 %v497
    %v873 = vunpack.c.l.b16 %v498
    %v874 = vunpack.c.h.b16 %v498
    %v875 = vunpack.c.l.b16 %v499
    %v876 = vunpack.c.h.b16 %v499
    %v877 = vunpack.c.l.b16 %v500
    %v878 = vunpack.c.h.b16 %v500
    %v879 = vunpack.c.l.b16 %v501
    %v880 = vunpack.c.h.b16 %v501
    %v881 = vunpack.c.l.b16 %v502
    %v882 = vunpack.c.h.b16 %v502
    %v883 = vunpack.c.l.b16 %v503
    %v884 = vunpack.c.h.b16 %v503
    %v885 = vunpack.c.l.b16 %v504
    %v886 = vunpack.c.h.b16 %v504
    %v887 = vunpack.c.l.b16 %v505
    %v888 = vunpack.c.h.b16 %v505
    %v889 = vunpack.c.l.b16 %v506
    %v890 = vunpack.c.h.b16 %v506
    %v891 = vunpack.c.l.b16 %v507
    %v892 = vunpack.c.h.b16 %v507
    %v893 = vunpack.c.l.b16 %v508
    %v894 = vunpack.c.h.b16 %v508
    %v895 = vunpack.c.l.b16 %v509
    %v896 = vunpack.c.h.b16 %v509
    %v897 = vunpack.c.l.b16 %v510
    %v898 = vunpack.c.h.b16 %v510
    %v899 = vunpack.c.l.b16 %v511
    %v900 = vunpack.c.h.b16 %v511
    %v901 = vunpack.c.l.b16 %v512
    %v902 = vunpack.c.h.b16 %v512
    %v903 = vunpack.c.l.b16 %v513
    %v904 = vunpack.c.h.b16 %v513
    %v905 = vunpack.c.l.b16 %v514
    %v906 = vunpack.c.h.b16 %v514
    %v907 = vunpack.c.l.b16 %v515
    %v908 = vunpack.c.h.b16 %v515
    %v909 = vunpack.c.l.b16 %v516
    %v910 = vunpack.c.h.b16 %v516
    %v911 = vunpack.c.l.b16 %v517
    %v912 = vunpack.c.h.b16 %v517
    %v913 = vunpack.c.l.b16 %v518
    %v914 = vunpack.c.h.b16 %v518
    %v915 = vunpack.c.l.b16 %v519
    %v916 = vunpack.c.h.b16 %v519
    %v917 = vunpack.c.l.b16 %v520
    %v918 = vunpack.c.h.b16 %v520
    %v919 = vunpack.c.l.b16 %v521
    %v920 = vunpack.c.h.b16 %v521
    %v921 = vunpack.c.l.b16 %v522
    %v922 = vunpack.c.h.b16 %v522
    %v923 = vunpack.c.l.b16 %v523
    %v924 = vunpack.c.h.b16 %v523
    %v925 = vunpack.c.l.b16 %v524
    %v926 = vunpack.c.h.b16 %v524
    %v927 = vunpack.c.l.b16 %v525
    %v928 = vunpack.c.h.b16 %v525
    %v929 = vunpack.c.l.b16 %v526
    %v930 = vunpack.c.h.b16 %v526
    %v931 = vunpack.c.l.b16 %v527
    %v932 = vunpack.c.h.b16 %v527
    %v933 = vunpack.c.l.b16 %v528
    %v934 = vunpack.c.h.b16 %v528
    %v935 = vpack.c.b16 %v683, %v679
    %v936 = vpack.c.b16 %v684, %v680
    %v937 = vpack.c.b16 %v685, %v681
    %v938 = vpack.c.b16 %v686, %v682
    %v939 = vpack.c.b16 %v691, %v687
    %v940 = vpack.c.b16 %v692, %v688
    %v941 = vpack.c.b16 %v693, %v689
    %v942 = vpack.c.b16 %v694, %v690
    %v943 = vpack.c.b16 %v699, %v695
    %v944 = vpack.c.b16 %v700, %v696
    %v945 = vpack.c.b16 %v701, %v697
    %v946 = vpack.c.b16 %v702, %v698
    %v947 = vpack.c.b16 %v707, %v703
    %v948 = vpack.c.b16 %v708, %v704
    %v949 = vpack.c.b16 %v709, %v705
    %v950 = vpack.c.b16 %v710, %v706
    %v951 = vpack.c.b16 %v715, %v711
    %v952 = vpack.c.b16 %v716, %v712
    %v953 = vpack.c.b16 %v717, %v713
    %v954 = vpack.c.b16 %v718, %v714
    %v955 = vpack.c.b16 %v723, %v719
    %v956 = vpack.c.b16 %v724, %v720
    %v957 = vpack.c.b16 %v725, %v721
    %v958 = vpack.c.b16 %v726, %v722
    %v959 = vpack.c.b16 %v731, %v727
    %v960 = vpack.c.b16 %v732, %v728
    %v961 = vpack.c.b16 %v733, %v729
    %v962 = vpack.c.b16 %v734, %v730
    %v963 = vpack.c.b16 %v739, %v735
    %v964 = vpack.c.b16 %v740, %v736
    %v965 = vpack.c.b16 %v741, %v737
    %v966 = vpack.c.b16 %v742, %v738
    %v967 = vpack.c.b16 %v747, %v743
    %v968 = vpack.c.b16 %v748, %v744
    %v969 = vpack.c.b16 %v749, %v745
    %v970 = vpack.c.b16 %v750, %v746
    %v971 = vpack.c.b16 %v755, %v751
    %v972 = vpack.c.b16 %v756, %v752
    %v973 = vpack.c.b16 %v757, %v753
    %v974 = vpack.c.b16 %v758, %v754
    %v975 = vpack.c.b16 %v763, %v759
    %v976 = vpack.c.b16 %v764, %v760
    %v977 = vpack.c.b16 %v765, %v761
    %v978 = vpack.c.b16 %v766, %v762
    %v979 = vpack.c.b16 %v771, %v767
    %v980 = vpack.c.b16 %v772, %v768
    %v981 = vpack.c.b16 %v773, %v769
    %v982 = vpack.c.b16 %v774, %v770
    %v983 = vpack.c.b16 %v779, %v775
    %v984 = vpack.c.b16 %v780, %v776
    %v985 = vpack.c.b16 %v781, %v777
    %v986 = vpack.c.b16 %v782, %v778
    %v987 = vpack.c.b16 %v787, %v783
    %v988 = vpack.c.b16 %v788, %v784
    %v989 = vpack.c.b16 %v789, %v785
    %v990 = vpack.c.b16 %v790, %v786
    %v991 = vpack.c.b16 %v795, %v791
    %v992 = vpack.c.b16 %v796, %v792
    %v993 = vpack.c.b16 %v797, %v793
    %v994 = vpack.c.b16 %v798, %v794
    %v995 = vpack.c.b16 %v803, %v799
    %v996 = vpack.c.b16 %v804, %v800
    %v997 = vpack.c.b16 %v805, %v801
    %v998 = vpack.c.b16 %v806, %v802
    %v999 = vpack.c.b16 %v811, %v807
    %v1000 = vpack.c.b16 %v812, %v808
    %v1001 = vpack.c.b16 %v813, %v809
    %v1002 = vpack.c.b16 %v814, %v810
    %v1003 = vpack.c.b16 %v819, %v815
    %v1004 = vpack.c.b16 %v820, %v816
    %v1005 = vpack.c.b16 %v821, %v817
    %v1006 = vpack.c.b16 %v822, %v818
    %v1007 = vpack.c.b16 %v827, %v823
    %v1008 = vpack.c.b16 %v828, %v824
    %v1009 = vpack.c.b16 %v829, %v825
    %v1010 = vpack.c.b16 %v830, %v826
    %v1011 = vpack.c.b16 %v835, %v831
    %v1012 = vpack.c.b16 %v836, %v832
    %v1013 = vpack.c.b16 %v837, %v833
    %v1014 = vpack.c.b16 %v838, %v834
    %v1015 = vpack.c.b16 %v843, %v839
    %v1016 = vpack.c.b16 %v844, %v840
    %v1017 = vpack.c.b16 %v845, %v841
    %v1018 = vpack.c.b16 %v846, %v842
    %v1019 = vpack.c.b16 %v851, %v847
    %v1020 = vpack.c.b16 %v852, %v848
    %v1021 = vpack.c.b16 %v853, %v849
    %v1022 = vpack.c.b16 %v854, %v850
    %v1023 = vpack.c.b16 %v859, %v855
    %v1024 = vpack.c.b16 %v860, %v856
    %v1025 = vpack.c.b16 %v861, %v857
    %v1026 = vpack.c.b16 %v862, %v858
    %v1027 = vpack.c.b16 %v867, %v863
    %v1028 = vpack.c.b16 %v868, %v864
    %v1029 = vpack.c.b16 %v869, %v865
    %v1030 = vpack.c.b16 %v870, %v866
    %v1031 = vpack.c.b16 %v875, %v871
    %v1032 = vpack.c.b16 %v876, %v872
    %v1033 = vpack.c.b16 %v877, %v873
    %v1034 = vpack.c.b16 %v878, %v874
    %v1035 = vpack.c.b16 %v883, %v879
    %v1036 = vpack.c.b16 %v884, %v880
    %v1037 = vpack.c.b16 %v885, %v881
    %v1038 = vpack.c.b16 %v886, %v882
    %v1039 = vpack.c.b16 %v891, %v887
    %v1040 = vpack.c.b16 %v892, %v888
    %v1041 = vpack.c.b16 %v893, %v889
    %v1042 = vpack.c.b16 %v894, %v890
    %v1043 = vpack.c.b16 %v899, %v895
    %v1044 = vpack.c.b16 %v900, %v896
    %v1045 = vpack.c.b16 %v901, %v897
    %v1046 = vpack.c.b16 %v902, %v898
    %v1047 = vpack.c.b16 %v907, %v903
    %v1048 = vpack.c.b16 %v908, %v904
    %v1049 = vpack.c.b16 %v909, %v905
    %v1050 = vpack.c.b16 %v910, %v906
    %v1051 = vpack.c.b16 %v915, %v911
    %v1052 = vpack.c.b16 %v916, %v912
    %v1053 = vpack.c.b16 %v917, %v913
    %v1054 = vpack.c.b16 %v918, %v914
    %v1055 = vpack.c.b16 %v923, %v919
    %v1056 = vpack.c.b16 %v924, %v920
    %v1057 = vpack.c.b16 %v925, %v921
    %v1058 = vpack.c.b16 %v926, %v922
    %v1059 = vpack.c.b16 %v931, %v927
    %v1060 = vpack.c.b16 %v932, %v928
    %v1061 = vpack.c.b16 %v933, %v929
    %v1062 = vpack.c.b16 %v934, %v930
    %1191 = vmatprep.subr.bf16.mxu0 %v936
    %1192 = vmatpush1.bf16.msra.mxu0 %v935
    %1193 = vmatprep.subr.bf16.mxu0 %v940
    %1194 = vmatpush1.bf16.msra.mxu0 %v939
    %1195 = vmatprep.subr.bf16.mxu0 %v944
    %1196 = vmatpush1.bf16.msra.mxu0 %v943
    %1197 = vmatprep.subr.bf16.mxu0 %v948
    %1198 = vmatpush1.bf16.msra.mxu0 %v947
    %1199 = vmatprep.subr.bf16.mxu0 %v952
    %1200 = vmatpush1.bf16.msra.mxu0 %v951
    %1201 = vmatprep.subr.bf16.mxu0 %v956
    %1202 = vmatpush1.bf16.msra.mxu0 %v955
    %1203 = vmatprep.subr.bf16.mxu0 %v960
    %1204 = vmatpush1.bf16.msra.mxu0 %v959
    %1205 = vmatprep.subr.bf16.mxu0 %v964
    %1206 = vmatpush1.bf16.msra.mxu0 %v963
    %1207 = vmatprep.subr.bf16.mxu0 %v968
    %1208 = vmatpush1.bf16.msra.mxu0 %v967
    %1209 = vmatprep.subr.bf16.mxu0 %v972
    %1210 = vmatpush1.bf16.msra.mxu0 %v971
    %1211 = vmatprep.subr.bf16.mxu0 %v976
    %1212 = vmatpush1.bf16.msra.mxu0 %v975
    %1213 = vmatprep.subr.bf16.mxu0 %v980
    %1214 = vmatpush1.bf16.msra.mxu0 %v979
    %1215 = vmatprep.subr.bf16.mxu0 %v984
    %1216 = vmatpush1.bf16.msra.mxu0 %v983
    %1217 = vmatprep.subr.bf16.mxu0 %v988
    %1218 = vmatpush1.bf16.msra.mxu0 %v987
    %1219 = vmatprep.subr.bf16.mxu0 %v992
    %1220 = vmatpush1.bf16.msra.mxu0 %v991
    %1221 = vmatprep.subr.bf16.mxu0 %v996
    %1222 = vmatpush1.bf16.msra.mxu0 %v995
    %1223 = vmatprep.mubr.bf16.mxu0 %v398
    %1224 = vmatmul.mubr.bf16.gmra.mrb[0].mxu0 %v397
    %v1225 = vpop.f32.mrb[0].mxu0
    %v1226 = vadd.f32 %v534, %v1225
    %v1227 = vpop.f32.mrb[0].mxu0
    %v1228 = vadd.f32 %v538, %v1227
    %v1229 = vpop.f32.mrb[0].mxu0
    %v1230 = vpop.f32.mrb[0].mxu0
    %1231 = vdwg.mxu0
    %1232 = vmatprep.subr.bf16.mxu0 %v1000
    %1233 = vmatpush1.bf16.msra.mxu0 %v999
    %1234 = vmatprep.subr.bf16.mxu0 %v1004
    %1235 = vmatpush1.bf16.msra.mxu0 %v1003
    %1236 = vmatprep.subr.bf16.mxu0 %v1008
    %1237 = vmatpush1.bf16.msra.mxu0 %v1007
    %1238 = vmatprep.subr.bf16.mxu0 %v1012
    %1239 = vmatpush1.bf16.msra.mxu0 %v1011
    %1240 = vmatprep.subr.bf16.mxu0 %v1016
    %1241 = vmatpush1.bf16.msra.mxu0 %v1015
    %1242 = vmatprep.subr.bf16.mxu0 %v1020
    %1243 = vmatpush1.bf16.msra.mxu0 %v1019
    %1244 = vmatprep.subr.bf16.mxu0 %v1024
    %1245 = vmatpush1.bf16.msra.mxu0 %v1023
    %1246 = vmatprep.subr.bf16.mxu0 %v1028
    %1247 = vmatpush1.bf16.msra.mxu0 %v1027
    %1248 = vmatprep.subr.bf16.mxu0 %v1032
    %1249 = vmatpush1.bf16.msra.mxu0 %v1031
    %1250 = vmatprep.subr.bf16.mxu0 %v1036
    %1251 = vmatpush1.bf16.msra.mxu0 %v1035
    %1252 = vmatprep.subr.bf16.mxu0 %v1040
    %1253 = vmatpush1.bf16.msra.mxu0 %v1039
    %1254 = vmatprep.subr.bf16.mxu0 %v1044
    %1255 = vmatpush1.bf16.msra.mxu0 %v1043
    %1256 = vmatprep.subr.bf16.mxu0 %v1048
    %1257 = vmatpush1.bf16.msra.mxu0 %v1047
    %1258 = vmatprep.subr.bf16.mxu0 %v1052
    %1259 = vmatpush1.bf16.msra.mxu0 %v1051
    %1260 = vmatprep.subr.bf16.mxu0 %v1056
    %1261 = vmatpush1.bf16.msra.mxu0 %v1055
    %1262 = vmatprep.subr.bf16.mxu0 %v1060
    %1263 = vmatpush1.bf16.msra.mxu0 %v1059
    %1264 = vmatprep.mubr.bf16.mxu0 %v400
    %1265 = vmatmul.mubr.bf16.gmra.mrb[0].mxu0 %v399
    %v1266 = vpop.f32.mrb[0].mxu0
    %v1267 = vadd.f32 %v1226, %v1266
    %v1268 = vpop.f32.mrb[0].mxu0
    %v1269 = vadd.f32 %v1228, %v1268
    %v1270 = vpop.f32.mrb[0].mxu0
    %v1271 = vpop.f32.mrb[0].mxu0
    %1272 = vdwg.mxu0
    %1273 = vmatprep.subr.bf16.mxu0 %v938
    %1274 = vmatpush1.bf16.msra.mxu0 %v937
    %1275 = vmatprep.subr.bf16.mxu0 %v942
    %1276 = vmatpush1.bf16.msra.mxu0 %v941
    %1277 = vmatprep.subr.bf16.mxu0 %v946
    %1278 = vmatpush1.bf16.msra.mxu0 %v945
    %1279 = vmatprep.subr.bf16.mxu0 %v950
    %1280 = vmatpush1.bf16.msra.mxu0 %v949
    %1281 = vmatprep.subr.bf16.mxu0 %v954
    %1282 = vmatpush1.bf16.msra.mxu0 %v953
    %1283 = vmatprep.subr.bf16.mxu0 %v958
    %1284 = vmatpush1.bf16.msra.mxu0 %v957
    %1285 = vmatprep.subr.bf16.mxu0 %v962
    %1286 = vmatpush1.bf16.msra.mxu0 %v961
    %1287 = vmatprep.subr.bf16.mxu0 %v966
    %1288 = vmatpush1.bf16.msra.mxu0 %v965
    %1289 = vmatprep.subr.bf16.mxu0 %v970
    %1290 = vmatpush1.bf16.msra.mxu0 %v969
    %1291 = vmatprep.subr.bf16.mxu0 %v974
    %1292 = vmatpush1.bf16.msra.mxu0 %v973
    %1293 = vmatprep.subr.bf16.mxu0 %v978
    %1294 = vmatpush1.bf16.msra.mxu0 %v977
    %1295 = vmatprep.subr.bf16.mxu0 %v982
    %1296 = vmatpush1.bf16.msra.mxu0 %v981
    %1297 = vmatprep.subr.bf16.mxu0 %v986
    %1298 = vmatpush1.bf16.msra.mxu0 %v985
    %1299 = vmatprep.subr.bf16.mxu0 %v990
    %1300 = vmatpush1.bf16.msra.mxu0 %v989
    %1301 = vmatprep.subr.bf16.mxu0 %v994
    %1302 = vmatpush1.bf16.msra.mxu0 %v993
    %1303 = vmatprep.subr.bf16.mxu0 %v998
    %1304 = vmatpush1.bf16.msra.mxu0 %v997
    %1305 = vmatprep.mubr.bf16.mxu0 %v398
    %1306 = vmatmul.mubr.bf16.gmra.mrb[0].mxu0 %v397
    %v1307 = vpop.f32.mrb[0].mxu0
    %v1308 = vadd.f32 %v542, %v1307
    %v1309 = vpop.f32.mrb[0].mxu0
    %v1310 = vadd.f32 %v546, %v1309
    %v1311 = vpop.f32.mrb[0].mxu0
    %v1312 = vpop.f32.mrb[0].mxu0
    %1313 = vdwg.mxu0
    %1314 = vmatprep.subr.bf16.mxu0 %v1002
    %1315 = vmatpush1.bf16.msra.mxu0 %v1001
    %1316 = vmatprep.subr.bf16.mxu0 %v1006
    %1317 = vmatpush1.bf16.msra.mxu0 %v1005
    %1318 = vmatprep.subr.bf16.mxu0 %v1010
    %1319 = vmatpush1.bf16.msra.mxu0 %v1009
    %1320 = vmatprep.subr.bf16.mxu0 %v1014
    %1321 = vmatpush1.bf16.msra.mxu0 %v1013
    %1322 = vmatprep.subr.bf16.mxu0 %v1018
    %1323 = vmatpush1.bf16.msra.mxu0 %v1017
    %1324 = vmatprep.subr.bf16.mxu0 %v1022
    %1325 = vmatpush1.bf16.msra.mxu0 %v1021
    %1326 = vmatprep.subr.bf16.mxu0 %v1026
    %1327 = vmatpush1.bf16.msra.mxu0 %v1025
    %1328 = vmatprep.subr.bf16.mxu0 %v1030
    %1329 = vmatpush1.bf16.msra.mxu0 %v1029
    %1330 = vmatprep.subr.bf16.mxu0 %v1034
    %1331 = vmatpush1.bf16.msra.mxu0 %v1033
    %1332 = vmatprep.subr.bf16.mxu0 %v1038
    %1333 = vmatpush1.bf16.msra.mxu0 %v1037
    %1334 = vmatprep.subr.bf16.mxu0 %v1042
    %1335 = vmatpush1.bf16.msra.mxu0 %v1041
    %1336 = vmatprep.subr.bf16.mxu0 %v1046
    %1337 = vmatpush1.bf16.msra.mxu0 %v1045
    %1338 = vmatprep.subr.bf16.mxu0 %v1050
    %1339 = vmatpush1.bf16.msra.mxu0 %v1049
    %1340 = vmatprep.subr.bf16.mxu0 %v1054
    %1341 = vmatpush1.bf16.msra.mxu0 %v1053
    %1342 = vmatprep.subr.bf16.mxu0 %v1058
    %1343 = vmatpush1.bf16.msra.mxu0 %v1057
    %1344 = vmatprep.subr.bf16.mxu0 %v1062
    %1345 = vmatpush1.bf16.msra.mxu0 %v1061
    %1346 = vmatprep.mubr.bf16.mxu0 %v400
    %1347 = vmatmul.mubr.bf16.gmra.mrb[0].mxu0 %v399
    %v1348 = vpop.f32.mrb[0].mxu0
    %v1349 = vadd.f32 %v1308, %v1348
    %v1350 = vpop.f32.mrb[0].mxu0
    %v1351 = vadd.f32 %v1310, %v1350
    %v1352 = vpop.f32.mrb[0].mxu0
    %v1353 = vpop.f32.mrb[0].mxu0
    %1354 = vdwg.mxu0
    %v1355 = vmax.f32 %v1267, 0.0
    %v1356 = vmax.f32 %v1269, 0.0
    %v1357 = vmax.f32 %v1349, 0.0
    %v1358 = vmax.f32 %v1351, 0.0
    %v1359 = vpack.c.bf16 %v1355, %v1355
    %v1360 = vpack.c.bf16 %v1356, %v1356
    %v1361 = vpack.c.bf16 %v1357, %v1357
    %v1362 = vpack.c.bf16 %v1358, %v1358
    %v1363 = vld [vmem:[#allocation7] sm:$0xff]
    %v1364 = vld [vmem:[#allocation7 + $0x8] sm:$0xff]
    %v1365 = vld [vmem:[#allocation7 + $0x10] sm:$0xff]
    %v1366 = vld [vmem:[#allocation7 + $0x18] sm:$0xff]
    %v1367 = vld [vmem:[#allocation7 + $0x20] sm:$0xff]
    %v1368 = vld [vmem:[#allocation7 + $0x28] sm:$0xff]
    %v1369 = vld [vmem:[#allocation7 + $0x30] sm:$0xff]
    %v1370 = vld [vmem:[#allocation7 + $0x38] sm:$0xff]
    %v1371 = vld [vmem:[#allocation7 + $0x40] sm:$0xff]
    %v1372 = vld [vmem:[#allocation7 + $0x48] sm:$0xff]
    %v1373 = vld [vmem:[#allocation7 + $0x50] sm:$0xff]
    %v1374 = vld [vmem:[#allocation7 + $0x58] sm:$0xff]
    %v1375 = vld [vmem:[#allocation7 + $0x60] sm:$0xff]
    %v1376 = vld [vmem:[#allocation7 + $0x68] sm:$0xff]
    %v1377 = vld [vmem:[#allocation7 + $0x70] sm:$0xff]
    %v1378 = vld [vmem:[#allocation7 + $0x78] sm:$0xff]
    %v1379 = vld [vmem:[#allocation7 + $0x80] sm:$0xff]
    %v1380 = vld [vmem:[#allocation7 + $0x88] sm:$0xff]
    %v1381 = vld [vmem:[#allocation7 + $0x90] sm:$0xff]
    %v1382 = vld [vmem:[#allocation7 + $0x98] sm:$0xff]
    %v1383 = vld [vmem:[#allocation7 + $0xa0] sm:$0xff]
    %v1384 = vld [vmem:[#allocation7 + $0xa8] sm:$0xff]
    %v1385 = vld [vmem:[#allocation7 + $0xb0] sm:$0xff]
    %v1386 = vld [vmem:[#allocation7 + $0xb8] sm:$0xff]
    %v1387 = vld [vmem:[#allocation7 + $0xc0] sm:$0xff]
    %v1388 = vld [vmem:[#allocation7 + $0xc8] sm:$0xff]
    %v1389 = vld [vmem:[#allocation7 + $0xd0] sm:$0xff]
    %v1390 = vld [vmem:[#allocation7 + $0xd8] sm:$0xff]
    %v1391 = vld [vmem:[#allocation7 + $0xe0] sm:$0xff]
    %v1392 = vld [vmem:[#allocation7 + $0xe8] sm:$0xff]
    %v1393 = vld [vmem:[#allocation7 + $0xf0] sm:$0xff]
    %v1394 = vld [vmem:[#allocation7 + $0xf8] sm:$0xff]
    %v1395 = vld [vmem:[#allocation7 + $0x100] sm:$0xff]
    %v1396 = vld [vmem:[#allocation7 + $0x108] sm:$0xff]
    %v1397 = vld [vmem:[#allocation7 + $0x110] sm:$0xff]
    %v1398 = vld [vmem:[#allocation7 + $0x118] sm:$0xff]
    %v1399 = vld [vmem:[#allocation7 + $0x120] sm:$0xff]
    %v1400 = vld [vmem:[#allocation7 + $0x128] sm:$0xff]
    %v1401 = vld [vmem:[#allocation7 + $0x130] sm:$0xff]
    %v1402 = vld [vmem:[#allocation7 + $0x138] sm:$0xff]
    %v1403 = vld [vmem:[#allocation7 + $0x140] sm:$0xff]
    %v1404 = vld [vmem:[#allocation7 + $0x148] sm:$0xff]
    %v1405 = vld [vmem:[#allocation7 + $0x150] sm:$0xff]
    %v1406 = vld [vmem:[#allocation7 + $0x158] sm:$0xff]
    %v1407 = vld [vmem:[#allocation7 + $0x160] sm:$0xff]
    %v1408 = vld [vmem:[#allocation7 + $0x168] sm:$0xff]
    %v1409 = vld [vmem:[#allocation7 + $0x170] sm:$0xff]
    %v1410 = vld [vmem:[#allocation7 + $0x178] sm:$0xff]
    %v1411 = vld [vmem:[#allocation7 + $0x180] sm:$0xff]
    %v1412 = vld [vmem:[#allocation7 + $0x188] sm:$0xff]
    %v1413 = vld [vmem:[#allocation7 + $0x190] sm:$0xff]
    %v1414 = vld [vmem:[#allocation7 + $0x198] sm:$0xff]
    %v1415 = vld [vmem:[#allocation7 + $0x1a0] sm:$0xff]
    %v1416 = vld [vmem:[#allocation7 + $0x1a8] sm:$0xff]
    %v1417 = vld [vmem:[#allocation7 + $0x1b0] sm:$0xff]
    %v1418 = vld [vmem:[#allocation7 + $0x1b8] sm:$0xff]
    %v1419 = vld [vmem:[#allocation7 + $0x1c0] sm:$0xff]
    %v1420 = vld [vmem:[#allocation7 + $0x1c8] sm:$0xff]
    %v1421 = vld [vmem:[#allocation7 + $0x1d0] sm:$0xff]
    %v1422 = vld [vmem:[#allocation7 + $0x1d8] sm:$0xff]
    %v1423 = vld [vmem:[#allocation7 + $0x1e0] sm:$0xff]
    %v1424 = vld [vmem:[#allocation7 + $0x1e8] sm:$0xff]
    %v1425 = vld [vmem:[#allocation7 + $0x1f0] sm:$0xff]
    %v1426 = vld [vmem:[#allocation7 + $0x1f8] sm:$0xff]
    %v1427 = vld [vmem:[%s6] sm:$0x3]
    %v1429 = vlaneseq
    %v1430 = vshrl.u32 %v1429, 7
    %v1431 = vsub.s32 0, %v1430
    %v1432 = vrot.slane %v1427, %v1431
    %v1433 = vlaneseq
    %v1434 = vshrl.u32 %v1433, 7
    %v1435 = vsub.s32 1, %v1434
    %v1436 = vrot.slane %v1427, %v1435
    %v1503 = vunpack.c.l.b16 %v1363
    %v1504 = vunpack.c.h.b16 %v1363
    %v1505 = vunpack.c.l.b16 %v1364
    %v1506 = vunpack.c.h.b16 %v1364
    %v1507 = vunpack.c.l.b16 %v1365
    %v1508 = vunpack.c.h.b16 %v1365
    %v1509 = vunpack.c.l.b16 %v1366
    %v1510 = vunpack.c.h.b16 %v1366
    %v1511 = vunpack.c.l.b16 %v1367
    %v1512 = vunpack.c.h.b16 %v1367
    %v1513 = vunpack.c.l.b16 %v1368
    %v1514 = vunpack.c.h.b16 %v1368
    %v1515 = vunpack.c.l.b16 %v1369
    %v1516 = vunpack.c.h.b16 %v1369
    %v1517 = vunpack.c.l.b16 %v1370
    %v1518 = vunpack.c.h.b16 %v1370
    %v1519 = vunpack.c.l.b16 %v1371
    %v1520 = vunpack.c.h.b16 %v1371
    %v1521 = vunpack.c.l.b16 %v1372
    %v1522 = vunpack.c.h.b16 %v1372
    %v1523 = vunpack.c.l.b16 %v1373
    %v1524 = vunpack.c.h.b16 %v1373
    %v1525 = vunpack.c.l.b16 %v1374
    %v1526 = vunpack.c.h.b16 %v1374
    %v1527 = vunpack.c.l.b16 %v1375
    %v1528 = vunpack.c.h.b16 %v1375
    %v1529 = vunpack.c.l.b16 %v1376
    %v1530 = vunpack.c.h.b16 %v1376
    %v1531 = vunpack.c.l.b16 %v1377
    %v1532 = vunpack.c.h.b16 %v1377
    %v1533 = vunpack.c.l.b16 %v1378
    %v1534 = vunpack.c.h.b16 %v1378
    %v1535 = vunpack.c.l.b16 %v1379
    %v1536 = vunpack.c.h.b16 %v1379
    %v1537 = vunpack.c.l.b16 %v1380
    %v1538 = vunpack.c.h.b16 %v1380
    %v1539 = vunpack.c.l.b16 %v1381
    %v1540 = vunpack.c.h.b16 %v1381
    %v1541 = vunpack.c.l.b16 %v1382
    %v1542 = vunpack.c.h.b16 %v1382
    %v1543 = vunpack.c.l.b16 %v1383
    %v1544 = vunpack.c.h.b16 %v1383
    %v1545 = vunpack.c.l.b16 %v1384
    %v1546 = vunpack.c.h.b16 %v1384
    %v1547 = vunpack.c.l.b16 %v1385
    %v1548 = vunpack.c.h.b16 %v1385
    %v1549 = vunpack.c.l.b16 %v1386
    %v1550 = vunpack.c.h.b16 %v1386
    %v1551 = vunpack.c.l.b16 %v1387
    %v1552 = vunpack.c.h.b16 %v1387
    %v1553 = vunpack.c.l.b16 %v1388
    %v1554 = vunpack.c.h.b16 %v1388
    %v1555 = vunpack.c.l.b16 %v1389
    %v1556 = vunpack.c.h.b16 %v1389
    %v1557 = vunpack.c.l.b16 %v1390
    %v1558 = vunpack.c.h.b16 %v1390
    %v1559 = vunpack.c.l.b16 %v1391
    %v1560 = vunpack.c.h.b16 %v1391
    %v1561 = vunpack.c.l.b16 %v1392
    %v1562 = vunpack.c.h.b16 %v1392
    %v1563 = vunpack.c.l.b16 %v1393
    %v1564 = vunpack.c.h.b16 %v1393
    %v1565 = vunpack.c.l.b16 %v1394
    %v1566 = vunpack.c.h.b16 %v1394
    %v1567 = vunpack.c.l.b16 %v1395
    %v1568 = vunpack.c.h.b16 %v1395
    %v1569 = vunpack.c.l.b16 %v1396
    %v1570 = vunpack.c.h.b16 %v1396
    %v1571 = vunpack.c.l.b16 %v1397
    %v1572 = vunpack.c.h.b16 %v1397
    %v1573 = vunpack.c.l.b16 %v1398
    %v1574 = vunpack.c.h.b16 %v1398
    %v1575 = vunpack.c.l.b16 %v1399
    %v1576 = vunpack.c.h.b16 %v1399
    %v1577 = vunpack.c.l.b16 %v1400
    %v1578 = vunpack.c.h.b16 %v1400
    %v1579 = vunpack.c.l.b16 %v1401
    %v1580 = vunpack.c.h.b16 %v1401
    %v1581 = vunpack.c.l.b16 %v1402
    %v1582 = vunpack.c.h.b16 %v1402
    %v1583 = vunpack.c.l.b16 %v1403
    %v1584 = vunpack.c.h.b16 %v1403
    %v1585 = vunpack.c.l.b16 %v1404
    %v1586 = vunpack.c.h.b16 %v1404
    %v1587 = vunpack.c.l.b16 %v1405
    %v1588 = vunpack.c.h.b16 %v1405
    %v1589 = vunpack.c.l.b16 %v1406
    %v1590 = vunpack.c.h.b16 %v1406
    %v1591 = vunpack.c.l.b16 %v1407
    %v1592 = vunpack.c.h.b16 %v1407
    %v1593 = vunpack.c.l.b16 %v1408
    %v1594 = vunpack.c.h.b16 %v1408
    %v1595 = vunpack.c.l.b16 %v1409
    %v1596 = vunpack.c.h.b16 %v1409
    %v1597 = vunpack.c.l.b16 %v1410
    %v1598 = vunpack.c.h.b16 %v1410
    %v1599 = vunpack.c.l.b16 %v1411
    %v1600 = vunpack.c.h.b16 %v1411
    %v1601 = vunpack.c.l.b16 %v1412
    %v1602 = vunpack.c.h.b16 %v1412
    %v1603 = vunpack.c.l.b16 %v1413
    %v1604 = vunpack.c.h.b16 %v1413
    %v1605 = vunpack.c.l.b16 %v1414
    %v1606 = vunpack.c.h.b16 %v1414
    %v1607 = vunpack.c.l.b16 %v1415
    %v1608 = vunpack.c.h.b16 %v1415
    %v1609 = vunpack.c.l.b16 %v1416
    %v1610 = vunpack.c.h.b16 %v1416
    %v1611 = vunpack.c.l.b16 %v1417
    %v1612 = vunpack.c.h.b16 %v1417
    %v1613 = vunpack.c.l.b16 %v1418
    %v1614 = vunpack.c.h.b16 %v1418
    %v1615 = vunpack.c.l.b16 %v1419
    %v1616 = vunpack.c.h.b16 %v1419
    %v1617 = vunpack.c.l.b16 %v1420
    %v1618 = vunpack.c.h.b16 %v1420
    %v1619 = vunpack.c.l.b16 %v1421
    %v1620 = vunpack.c.h.b16 %v1421
    %v1621 = vunpack.c.l.b16 %v1422
    %v1622 = vunpack.c.h.b16 %v1422
    %v1623 = vunpack.c.l.b16 %v1423
    %v1624 = vunpack.c.h.b16 %v1423
    %v1625 = vunpack.c.l.b16 %v1424
    %v1626 = vunpack.c.h.b16 %v1424
    %v1627 = vunpack.c.l.b16 %v1425
    %v1628 = vunpack.c.h.b16 %v1425
    %v1629 = vunpack.c.l.b16 %v1426
    %v1630 = vunpack.c.h.b16 %v1426
    %v1631 = vpack.c.b16 %v1505, %v1503
    %v1632 = vpack.c.b16 %v1506, %v1504
    %v1633 = vpack.c.b16 %v1509, %v1507
    %v1634 = vpack.c.b16 %v1510, %v1508
    %v1635 = vpack.c.b16 %v1513, %v1511
    %v1636 = vpack.c.b16 %v1514, %v1512
    %v1637 = vpack.c.b16 %v1517, %v1515
    %v1638 = vpack.c.b16 %v1518, %v1516
    %v1639 = vpack.c.b16 %v1521, %v1519
    %v1640 = vpack.c.b16 %v1522, %v1520
    %v1641 = vpack.c.b16 %v1525, %v1523
    %v1642 = vpack.c.b16 %v1526, %v1524
    %v1643 = vpack.c.b16 %v1529, %v1527
    %v1644 = vpack.c.b16 %v1530, %v1528
    %v1645 = vpack.c.b16 %v1533, %v1531
    %v1646 = vpack.c.b16 %v1534, %v1532
    %v1647 = vpack.c.b16 %v1537, %v1535
    %v1648 = vpack.c.b16 %v1538, %v1536
    %v1649 = vpack.c.b16 %v1541, %v1539
    %v1650 = vpack.c.b16 %v1542, %v1540
    %v1651 = vpack.c.b16 %v1545, %v1543
    %v1652 = vpack.c.b16 %v1546, %v1544
    %v1653 = vpack.c.b16 %v1549, %v1547
    %v1654 = vpack.c.b16 %v1550, %v1548
    %v1655 = vpack.c.b16 %v1553, %v1551
    %v1656 = vpack.c.b16 %v1554, %v1552
    %v1657 = vpack.c.b16 %v1557, %v1555
    %v1658 = vpack.c.b16 %v1558, %v1556
    %v1659 = vpack.c.b16 %v1561, %v1559
    %v1660 = vpack.c.b16 %v1562, %v1560
    %v1661 = vpack.c.b16 %v1565, %v1563
    %v1662 = vpack.c.b16 %v1566, %v1564
    %v1663 = vpack.c.b16 %v1569, %v1567
    %v1664 = vpack.c.b16 %v1570, %v1568
    %v1665 = vpack.c.b16 %v1573, %v1571
    %v1666 = vpack.c.b16 %v1574, %v1572
    %v1667 = vpack.c.b16 %v1577, %v1575
    %v1668 = vpack.c.b16 %v1578, %v1576
    %v1669 = vpack.c.b16 %v1581, %v1579
    %v1670 = vpack.c.b16 %v1582, %v1580
    %v1671 = vpack.c.b16 %v1585, %v1583
    %v1672 = vpack.c.b16 %v1586, %v1584
    %v1673 = vpack.c.b16 %v1589, %v1587
    %v1674 = vpack.c.b16 %v1590, %v1588
    %v1675 = vpack.c.b16 %v1593, %v1591
    %v1676 = vpack.c.b16 %v1594, %v1592
    %v1677 = vpack.c.b16 %v1597, %v1595
    %v1678 = vpack.c.b16 %v1598, %v1596
    %v1679 = vpack.c.b16 %v1601, %v1599
    %v1680 = vpack.c.b16 %v1602, %v1600
    %v1681 = vpack.c.b16 %v1605, %v1603
    %v1682 = vpack.c.b16 %v1606, %v1604
    %v1683 = vpack.c.b16 %v1609, %v1607
    %v1684 = vpack.c.b16 %v1610, %v1608
    %v1685 = vpack.c.b16 %v1613, %v1611
    %v1686 = vpack.c.b16 %v1614, %v1612
    %v1687 = vpack.c.b16 %v1617, %v1615
    %v1688 = vpack.c.b16 %v1618, %v1616
    %v1689 = vpack.c.b16 %v1621, %v1619
    %v1690 = vpack.c.b16 %v1622, %v1620
    %v1691 = vpack.c.b16 %v1625, %v1623
    %v1692 = vpack.c.b16 %v1626, %v1624
    %v1693 = vpack.c.b16 %v1629, %v1627
    %v1694 = vpack.c.b16 %v1630, %v1628
    %1759 = vmatprep.subr.bf16.mxu0 %v1632
    %1760 = vmatpush1.bf16.msra.mxu0 %v1631
    %1761 = vmatprep.subr.bf16.mxu0 %v1634
    %1762 = vmatpush1.bf16.msra.mxu0 %v1633
    %1763 = vmatprep.subr.bf16.mxu0 %v1636
    %1764 = vmatpush1.bf16.msra.mxu0 %v1635
    %1765 = vmatprep.subr.bf16.mxu0 %v1638
    %1766 = vmatpush1.bf16.msra.mxu0 %v1637
    %1767 = vmatprep.subr.bf16.mxu0 %v1640
    %1768 = vmatpush1.bf16.msra.mxu0 %v1639
    %1769 = vmatprep.subr.bf16.mxu0 %v1642
    %1770 = vmatpush1.bf16.msra.mxu0 %v1641
    %1771 = vmatprep.subr.bf16.mxu0 %v1644
    %1772 = vmatpush1.bf16.msra.mxu0 %v1643
    %1773 = vmatprep.subr.bf16.mxu0 %v1646
    %1774 = vmatpush1.bf16.msra.mxu0 %v1645
    %1775 = vmatprep.subr.bf16.mxu0 %v1648
    %1776 = vmatpush1.bf16.msra.mxu0 %v1647
    %1777 = vmatprep.subr.bf16.mxu0 %v1650
    %1778 = vmatpush1.bf16.msra.mxu0 %v1649
    %1779 = vmatprep.subr.bf16.mxu0 %v1652
    %1780 = vmatpush1.bf16.msra.mxu0 %v1651
    %1781 = vmatprep.subr.bf16.mxu0 %v1654
    %1782 = vmatpush1.bf16.msra.mxu0 %v1653
    %1783 = vmatprep.subr.bf16.mxu0 %v1656
    %1784 = vmatpush1.bf16.msra.mxu0 %v1655
    %1785 = vmatprep.subr.bf16.mxu0 %v1658
    %1786 = vmatpush1.bf16.msra.mxu0 %v1657
    %1787 = vmatprep.subr.bf16.mxu0 %v1660
    %1788 = vmatpush1.bf16.msra.mxu0 %v1659
    %1789 = vmatprep.subr.bf16.mxu0 %v1662
    %1790 = vmatpush1.bf16.msra.mxu0 %v1661
    %1791 = vmatprep.mubr.bf16.mxu0 %v1360
    %1792 = vmatmul.mubr.bf16.gmra.mrb[0].mxu0 %v1359
    %v1793 = vpop.f32.mrb[0].mxu0
    %v1794 = vadd.f32 %v1432, %v1793
    %v1795 = vpop.f32.mrb[0].mxu0
    %v1796 = vadd.f32 %v1436, %v1795
    %v1797 = vpop.f32.mrb[0].mxu0
    %v1798 = vpop.f32.mrb[0].mxu0
    %1799 = vdwg.mxu0
    %1800 = vmatprep.subr.bf16.mxu0 %v1664
    %1801 = vmatpush1.bf16.msra.mxu0 %v1663
    %1802 = vmatprep.subr.bf16.mxu0 %v1666
    %1803 = vmatpush1.bf16.msra.mxu0 %v1665
    %1804 = vmatprep.subr.bf16.mxu0 %v1668
    %1805 = vmatpush1.bf16.msra.mxu0 %v1667
    %1806 = vmatprep.subr.bf16.mxu0 %v1670
    %1807 = vmatpush1.bf16.msra.mxu0 %v1669
    %1808 = vmatprep.subr.bf16.mxu0 %v1672
    %1809 = vmatpush1.bf16.msra.mxu0 %v1671
    %1810 = vmatprep.subr.bf16.mxu0 %v1674
    %1811 = vmatpush1.bf16.msra.mxu0 %v1673
    %1812 = vmatprep.subr.bf16.mxu0 %v1676
    %1813 = vmatpush1.bf16.msra.mxu0 %v1675
    %1814 = vmatprep.subr.bf16.mxu0 %v1678
    %1815 = vmatpush1.bf16.msra.mxu0 %v1677
    %1816 = vmatprep.subr.bf16.mxu0 %v1680
    %1817 = vmatpush1.bf16.msra.mxu0 %v1679
    %1818 = vmatprep.subr.bf16.mxu0 %v1682
    %1819 = vmatpush1.bf16.msra.mxu0 %v1681
    %1820 = vmatprep.subr.bf16.mxu0 %v1684
    %1821 = vmatpush1.bf16.msra.mxu0 %v1683
    %1822 = vmatprep.subr.bf16.mxu0 %v1686
    %1823 = vmatpush1.bf16.msra.mxu0 %v1685
    %1824 = vmatprep.subr.bf16.mxu0 %v1688
    %1825 = vmatpush1.bf16.msra.mxu0 %v1687
    %1826 = vmatprep.subr.bf16.mxu0 %v1690
    %1827 = vmatpush1.bf16.msra.mxu0 %v1689
    %1828 = vmatprep.subr.bf16.mxu0 %v1692
    %1829 = vmatpush1.bf16.msra.mxu0 %v1691
    %1830 = vmatprep.subr.bf16.mxu0 %v1694
    %1831 = vmatpush1.bf16.msra.mxu0 %v1693
    %1832 = vmatprep.mubr.bf16.mxu0 %v1362
    %1833 = vmatmul.mubr.bf16.gmra.mrb[0].mxu0 %v1361
    %v1834 = vpop.f32.mrb[0].mxu0
    %v1835 = vadd.f32 %v1794, %v1834
    %v1836 = vpop.f32.mrb[0].mxu0
    %v1837 = vadd.f32 %v1796, %v1836
    %v1838 = vpop.f32.mrb[0].mxu0
    %v1839 = vpop.f32.mrb[0].mxu0
    %1840 = vdwg.mxu0
    %v1841 = vmax.f32 %v1835, 0.0
    %v1842 = vmax.f32 %v1837, 0.0
    %v1843 = vpack.c.bf16 %v1841, %v1841
    %v1844 = vpack.c.bf16 %v1842, %v1842
    %v1845 = vld [vmem:[%s7] sm:$0xf]
    %v1846 = vld [vmem:[%s7 + $0x4] sm:$0xf]
    %v1847 = vld [vmem:[%s7 + $0x8] sm:$0xf]
    %v1848 = vld [vmem:[%s7 + $0xc] sm:$0xf]
    %v1849 = vld [vmem:[%s7 + $0x10] sm:$0xf]
    %v1850 = vld [vmem:[%s7 + $0x14] sm:$0xf]
    %v1851 = vld [vmem:[%s7 + $0x18] sm:$0xf]
    %v1852 = vld [vmem:[%s7 + $0x1c] sm:$0xf]
    %v1853 = vld [vmem:[%s7 + $0x20] sm:$0xf]
    %v1854 = vld [vmem:[%s7 + $0x24] sm:$0xf]
    %v1855 = vld [vmem:[%s7 + $0x28] sm:$0xf]
    %v1856 = vld [vmem:[%s7 + $0x2c] sm:$0xf]
    %v1857 = vld [vmem:[%s7 + $0x30] sm:$0xf]
    %v1858 = vld [vmem:[%s7 + $0x34] sm:$0xf]
    %v1859 = vld [vmem:[%s7 + $0x38] sm:$0xf]
    %v1860 = vld [vmem:[%s7 + $0x3c] sm:$0xf]
    %v1861 = vld [vmem:[%s7 + $0x40] sm:$0xf]
    %v1862 = vld [vmem:[%s7 + $0x44] sm:$0xf]
    %v1863 = vld [vmem:[%s7 + $0x48] sm:$0xf]
    %v1864 = vld [vmem:[%s7 + $0x4c] sm:$0xf]
    %v1865 = vld [vmem:[%s7 + $0x50] sm:$0xf]
    %v1866 = vld [vmem:[%s7 + $0x54] sm:$0xf]
    %v1867 = vld [vmem:[%s7 + $0x58] sm:$0xf]
    %v1868 = vld [vmem:[%s7 + $0x5c] sm:$0xf]
    %v1869 = vld [vmem:[%s7 + $0x60] sm:$0xf]
    %v1870 = vld [vmem:[%s7 + $0x64] sm:$0xf]
    %v1871 = vld [vmem:[%s7 + $0x68] sm:$0xf]
    %v1872 = vld [vmem:[%s7 + $0x6c] sm:$0xf]
    %v1873 = vld [vmem:[%s7 + $0x70] sm:$0xf]
    %v1874 = vld [vmem:[%s7 + $0x74] sm:$0xf]
    %v1875 = vld [vmem:[%s7 + $0x78] sm:$0xf]
    %v1876 = vld [vmem:[%s7 + $0x7c] sm:$0xf]
    %v1877 = vld [vmem:[%s8] sm:$0x1]
    %v1879 = vlaneseq
    %v1880 = vshrl.u32 %v1879, 7
    %v1881 = vsub.s32 0, %v1880
    %v1882 = vrot.slane %v1877, %v1881
    %v1916 = vunpack.c.l.b16 %v1845
    %v1917 = vunpack.c.l.b16 %v1846
    %v1918 = vunpack.c.l.b16 %v1847
    %v1919 = vunpack.c.l.b16 %v1848
    %v1920 = vunpack.c.l.b16 %v1849
    %v1921 = vunpack.c.l.b16 %v1850
    %v1922 = vunpack.c.l.b16 %v1851
    %v1923 = vunpack.c.l.b16 %v1852
    %v1924 = vunpack.c.l.b16 %v1853
    %v1925 = vunpack.c.l.b16 %v1854
    %v1926 = vunpack.c.l.b16 %v1855
    %v1927 = vunpack.c.l.b16 %v1856
    %v1928 = vunpack.c.l.b16 %v1857
    %v1929 = vunpack.c.l.b16 %v1858
    %v1930 = vunpack.c.l.b16 %v1859
    %v1931 = vunpack.c.l.b16 %v1860
    %v1932 = vunpack.c.l.b16 %v1861
    %v1933 = vunpack.c.l.b16 %v1862
    %v1934 = vunpack.c.l.b16 %v1863
    %v1935 = vunpack.c.l.b16 %v1864
    %v1936 = vunpack.c.l.b16 %v1865
    %v1937 = vunpack.c.l.b16 %v1866
    %v1938 = vunpack.c.l.b16 %v1867
    %v1939 = vunpack.c.l.b16 %v1868
    %v1940 = vunpack.c.l.b16 %v1869
    %v1941 = vunpack.c.l.b16 %v1870
    %v1942 = vunpack.c.l.b16 %v1871
    %v1943 = vunpack.c.l.b16 %v1872
    %v1944 = vunpack.c.l.b16 %v1873
    %v1945 = vunpack.c.l.b16 %v1874
    %v1946 = vunpack.c.l.b16 %v1875
    %v1947 = vunpack.c.l.b16 %v1876
    %v1948 = vpack.c.b16 %v1917, %v1916
    %v1949 = vpack.c.b16 %v1919, %v1918
    %v1950 = vpack.c.b16 %v1921, %v1920
    %v1951 = vpack.c.b16 %v1923, %v1922
    %v1952 = vpack.c.b16 %v1925, %v1924
    %v1953 = vpack.c.b16 %v1927, %v1926
    %v1954 = vpack.c.b16 %v1929, %v1928
    %v1955 = vpack.c.b16 %v1931, %v1930
    %v1956 = vpack.c.b16 %v1933, %v1932
    %v1957 = vpack.c.b16 %v1935, %v1934
    %v1958 = vpack.c.b16 %v1937, %v1936
    %v1959 = vpack.c.b16 %v1939, %v1938
    %v1960 = vpack.c.b16 %v1941, %v1940
    %v1961 = vpack.c.b16 %v1943, %v1942
    %v1962 = vpack.c.b16 %v1945, %v1944
    %v1963 = vpack.c.b16 %v1947, %v1946
    %1980 = vmatprep.subr.bf16.mxu0 0
    %1981 = vmatpush1.bf16.msra.mxu0 %v1948
    %1982 = vmatprep.subr.bf16.mxu0 0
    %1983 = vmatpush1.bf16.msra.mxu0 %v1949
    %1984 = vmatprep.subr.bf16.mxu0 0
    %1985 = vmatpush1.bf16.msra.mxu0 %v1950
    %1986 = vmatprep.subr.bf16.mxu0 0
    %1987 = vmatpush1.bf16.msra.mxu0 %v1951
    %1988 = vmatprep.subr.bf16.mxu0 0
    %1989 = vmatpush1.bf16.msra.mxu0 %v1952
    %1990 = vmatprep.subr.bf16.mxu0 0
    %1991 = vmatpush1.bf16.msra.mxu0 %v1953
    %1992 = vmatprep.subr.bf16.mxu0 0
    %1993 = vmatpush1.bf16.msra.mxu0 %v1954
    %1994 = vmatprep.subr.bf16.mxu0 0
    %1995 = vmatpush1.bf16.msra.mxu0 %v1955
    %1996 = vmatprep.subr.bf16.mxu0 0
    %1997 = vmatpush1.bf16.msra.mxu0 %v1956
    %1998 = vmatprep.subr.bf16.mxu0 0
    %1999 = vmatpush1.bf16.msra.mxu0 %v1957
    %2000 = vmatprep.subr.bf16.mxu0 0
    %2001 = vmatpush1.bf16.msra.mxu0 %v1958
    %2002 = vmatprep.subr.bf16.mxu0 0
    %2003 = vmatpush1.bf16.msra.mxu0 %v1959
    %2004 = vmatprep.subr.bf16.mxu0 0
    %2005 = vmatpush1.bf16.msra.mxu0 %v1960
    %2006 = vmatprep.subr.bf16.mxu0 0
    %2007 = vmatpush1.bf16.msra.mxu0 %v1961
    %2008 = vmatprep.subr.bf16.mxu0 0
    %2009 = vmatpush1.bf16.msra.mxu0 %v1962
    %2010 = vmatprep.subr.bf16.mxu0 0
    %2011 = vmatpush1.bf16.msra.mxu0 %v1963
    %2012 = vmatprep.mubr.bf16.mxu0 %v1844
    %2013 = vmatmul.mubr.bf16.gmra.mrb[0].mxu0 %v1843
    %v2014 = vpop.f32.mrb[0].mxu0
    %v2015 = vadd.f32 %v1882, %v2014
    %v2016 = vpop.f32.mrb[0].mxu0
    %v2017 = vpop.f32.mrb[0].mxu0
    %v2018 = vpop.f32.mrb[0].mxu0
    %2019 = vdwg.mxu0
    %v2020 = vmax.f32 %v2015, 0.0
    %v2021 = vpack.c.bf16 %v2020, %v2020
    %v2022 = vld [vmem:[%s9] sm:$0xf]
    %v2023 = vld [vmem:[%s9 + $0x4] sm:$0xf]
    %v2024 = vld [vmem:[%s9 + $0x8] sm:$0xf]
    %v2025 = vld [vmem:[%s9 + $0xc] sm:$0xf]
    %v2026 = vld [vmem:[%s9 + $0x10] sm:$0xf]
    %v2027 = vld [vmem:[%s9 + $0x14] sm:$0xf]
    %v2028 = vld [vmem:[%s9 + $0x18] sm:$0xf]
    %v2029 = vld [vmem:[%s9 + $0x1c] sm:$0xf]
    %v2030 = vld [vmem:[%s10] sm:$0x1]
    %v2032 = vlaneseq
    %v2033 = vshrl.u32 %v2032, 7
    %v2034 = vsub.s32 0, %v2033
    %v2035 = vrot.slane %v2030, %v2034
    %v2045 = vunpack.c.l.b16 %v2022
    %v2046 = vunpack.c.l.b16 %v2023
    %v2047 = vunpack.c.l.b16 %v2024
    %v2048 = vunpack.c.l.b16 %v2025
    %v2049 = vunpack.c.l.b16 %v2026
    %v2050 = vunpack.c.l.b16 %v2027
    %v2051 = vunpack.c.l.b16 %v2028
    %v2052 = vunpack.c.l.b16 %v2029
    %v2053 = vpack.c.b16 %v2046, %v2045
    %v2054 = vpack.c.b16 %v2048, %v2047
    %v2055 = vpack.c.b16 %v2050, %v2049
    %v2056 = vpack.c.b16 %v2052, %v2051
    %vm2061 = vcmask 523264
    %v2063 = vsel %vm2061, %v2021, 0
    %2065 = vmatprep.subr.bf16.mxu0 0
    %2066 = vmatpush1.bf16.msra.mxu0 %v2053
    %2067 = vmatprep.subr.bf16.mxu0 0
    %2068 = vmatpush1.bf16.msra.mxu0 %v2054
    %2069 = vmatprep.subr.bf16.mxu0 0
    %2070 = vmatpush1.bf16.msra.mxu0 %v2055
    %2071 = vmatprep.subr.bf16.mxu0 0
    %2072 = vmatpush1.bf16.msra.mxu0 %v2056
    %2073 = vmatprep.subr.bf16.mxu0 0
    %2074 = vmatpush1.bf16.msra.mxu0 0
    %2075 = vmatprep.subr.bf16.mxu0 0
    %2076 = vmatpush1.bf16.msra.mxu0 0
    %2077 = vmatprep.subr.bf16.mxu0 0
    %2078 = vmatpush1.bf16.msra.mxu0 0
    %2079 = vmatprep.subr.bf16.mxu0 0
    %2080 = vmatpush1.bf16.msra.mxu0 0
    %2081 = vmatprep.subr.bf16.mxu0 0
    %2082 = vmatpush1.bf16.msra.mxu0 0
    %2083 = vmatprep.subr.bf16.mxu0 0
    %2084 = vmatpush1.bf16.msra.mxu0 0
    %2085 = vmatprep.subr.bf16.mxu0 0
    %2086 = vmatpush1.bf16.msra.mxu0 0
    %2087 = vmatprep.subr.bf16.mxu0 0
    %2088 = vmatpush1.bf16.msra.mxu0 0
    %2089 = vmatprep.subr.bf16.mxu0 0
    %2090 = vmatpush1.bf16.msra.mxu0 0
    %2091 = vmatprep.subr.bf16.mxu0 0
    %2092 = vmatpush1.bf16.msra.mxu0 0
    %2093 = vmatprep.subr.bf16.mxu0 0
    %2094 = vmatpush1.bf16.msra.mxu0 0
    %2095 = vmatprep.subr.bf16.mxu0 0
    %2096 = vmatpush1.bf16.msra.mxu0 0
    %2097 = vmatprep.mubr.bf16.mxu0 0
    %2098 = vmatmul.mubr.bf16.gmra.mrb[0].mxu0 %v2063
    %v2099 = vpop.f32.mrb[0].mxu0
    %v2100 = vadd.f32 %v2035, %v2099
    %v2101 = vpop.f32.mrb[0].mxu0
    %v2102 = vpop.f32.mrb[0].mxu0
    %v2103 = vpop.f32.mrb[0].mxu0
    %2104 = vdwg.mxu0
    %v2105 = vmax.f32 %v2100, 0.0
    %v2106 = vpack.c.bf16 %v2105, %v2105
    %v2107 = vld [vmem:[%s11] sm:$0xf]
    %v2108 = vld [vmem:[%s11 + $0x4] sm:$0xf]
    %v2109 = vld [vmem:[%s12] sm:$0x1]
    %v2111 = vlaneseq
    %v2112 = vshrl.u32 %v2111, 7
    %v2113 = vsub.s32 0, %v2112
    %v2114 = vrot.slane %v2109, %v2113
    %v2118 = vunpack.c.l.b16 %v2107
    %v2119 = vunpack.c.l.b16 %v2108
    %v2120 = vpack.c.b16 %v2119, %v2118
    %vm2122 = vcmask 130048
    %v2124 = vsel %vm2122, %v2106, 0
    %2126 = vmatprep.subr.bf16.mxu0 0
    %2127 = vmatpush1.bf16.msra.mxu0 %v2120
    %2128 = vmatprep.subr.bf16.mxu0 0
    %2129 = vmatpush1.bf16.msra.mxu0 0
    %2130 = vmatprep.subr.bf16.mxu0 0
    %2131 = vmatpush1.bf16.msra.mxu0 0
    %2132 = vmatprep.subr.bf16.mxu0 0
    %2133 = vmatpush1.bf16.msra.mxu0 0
    %2134 = vmatprep.subr.bf16.mxu0 0
    %2135 = vmatpush1.bf16.msra.mxu0 0
    %2136 = vmatprep.subr.bf16.mxu0 0
    %2137 = vmatpush1.bf16.msra.mxu0 0
    %2138 = vmatprep.subr.bf16.mxu0 0
    %2139 = vmatpush1.bf16.msra.mxu0 0
    %2140 = vmatprep.subr.bf16.mxu0 0
    %2141 = vmatpush1.bf16.msra.mxu0 0
    %2142 = vmatprep.subr.bf16.mxu0 0
    %2143 = vmatpush1.bf16.msra.mxu0 0
    %2144 = vmatprep.subr.bf16.mxu0 0
    %2145 = vmatpush1.bf16.msra.mxu0 0
    %2146 = vmatprep.subr.bf16.mxu0 0
    %2147 = vmatpush1.bf16.msra.mxu0 0
    %2148 = vmatprep.subr.bf16.mxu0 0
    %2149 = vmatpush1.bf16.msra.mxu0 0
    %2150 = vmatprep.subr.bf16.mxu0 0
    %2151 = vmatpush1.bf16.msra.mxu0 0
    %2152 = vmatprep.subr.bf16.mxu0 0
    %2153 = vmatpush1.bf16.msra.mxu0 0
    %2154 = vmatprep.subr.bf16.mxu0 0
    %2155 = vmatpush1.bf16.msra.mxu0 0
    %2156 = vmatprep.subr.bf16.mxu0 0
    %2157 = vmatpush1.bf16.msra.mxu0 0
    %2158 = vmatprep.mubr.bf16.mxu0 0
    %2159 = vmatmul.mubr.bf16.gmra.mrb[0].mxu0 %v2124
    %v2160 = vpop.f32.mrb[0].mxu0
    %v2161 = vadd.f32 %v2114, %v2160
    %v2162 = vpop.f32.mrb[0].mxu0
    %v2163 = vpop.f32.mrb[0].mxu0
    %v2164 = vpop.f32.mrb[0].mxu0
    %2165 = vdwg.mxu0
    %2166 = vst [vmem:[%s13] sm:$0xff] %v2161
    // Predicated region
    $region70: #{net2506_forward.1} parent=1 // pred_check
      _
    $region71: #{net2506_forward.1} parent=1 // pred_check_branch
      %2168 = sbr.rel (0) target = $region73
    $region72: #{net2506_forward.1} parent=1 // pred_region
      _
    $region73: #{net2506_forward.1} parent=1 // pred_fallthru
      _
    // Predicated region
    $region74: #{net2506_forward.1} parent=1 // pred_check
      _
    $region75: #{net2506_forward.1} parent=1 // pred_check_branch
      %2170 = sbr.rel (0) target = $region77
    $region76: #{net2506_forward.1} parent=1 // pred_region
      _
    $region77: #{net2506_forward.1} parent=1 // pred_fallthru
      _
    %2171 = vsyncpa [#allocation3], 1
    %2172 = vsyncpa [#allocation5], 1
    %2173 = vsyncpa [#allocation8], 1

</llo_original>
